<compile_context>
chip_gen: v6e
topology: v6e:2x2x1
jax: 0.10.0
libtpu: 0.0.40
codegen_flags: <defaults>
</compile_context>

<pallas_src>
import numpy as np
import jax
import jax.numpy as jnp
from jax.experimental import pallas as pl
from jax.experimental.pallas import tpu as pltpu


# ------------------------------ slab layouts --------------------------------

def _round_up(x, m):
    return ((x + m - 1) // m) * m


def _gru_slab_layout(E, H):
    # bf16 slab: row offsets rounded to the 16-row bf16 sublane tile.
    o_ih0 = 0
    o_hh0 = o_ih0 + _round_up(E, 16)
    o_big = o_hh0 + _round_up(H, 16)
    rows = o_big + _round_up(2 * H, 16)
    return (o_ih0, o_hh0, o_big), rows


def _head_slab_layout(H, R, Hd):
    # f32 slab: row offsets rounded to the 8-row sublane tile.
    offs, cur = [], 0
    for r in (H, H, R, Hd, Hd, Hd):     # wout0, wout1, w1, w2, w3, w4
        offs.append(cur)
        cur += _round_up(r, 8)
    return tuple(offs), cur


# ----------------------------- Pallas kernel --------------------------------

def make_feedback_kernel(E, H, R, Hd, L, T, Bp, gru_offs, head_offs):
    o_ih0, o_hh0, o_big = gru_offs
    o_out0, o_out1, o_w1, o_w2, o_w3, o_w4 = head_offs
    H2, H3, H4 = 2 * H, 3 * H, 4 * H

    def kernel(emb_ref, len_ref, gruw_ref, headw_ref, bias_ref, out_ref):
        lengths = len_ref[...]                                     # (Bp, 1) int32

        # --- static slices out of the packed weight slabs (tile-aligned offsets) ---
        wih0 = gruw_ref[o_ih0:o_ih0 + E, :H3]                      # bf16 (E, 3H)
        whh0 = gruw_ref[o_hh0:o_hh0 + H, :H3]                      # bf16 (H, 3H)
        wbig1 = gruw_ref[o_big:o_big + H2, :H4]                    # bf16 (2H, 4H)

        wout0 = headw_ref[o_out0:o_out0 + H, :R]                   # f32
        wout1 = headw_ref[o_out1:o_out1 + H, :R]
        w1 = headw_ref[o_w1:o_w1 + R, :Hd]
        w2 = headw_ref[o_w2:o_w2 + Hd, :Hd]
        w3 = headw_ref[o_w3:o_w3 + Hd, :Hd]
        w4 = headw_ref[o_w4:o_w4 + Hd, :L]

        bias0 = bias_ref[0:1, :H3]      # bih0 with bhh0 r/z halves folded in
        bias1 = bias_ref[1:2, :H4]      # merged L1 bias: [bih1_rz+bhh1_rz | bih1_n | bhh1_n]
        bhh0_n = bias_ref[2:3, :H]      # layer-0 n-gate recurrent bias (multiplied by r)
        bout = bias_ref[3:4, :R]
        b1 = bias_ref[4:5, :Hd]
        b2 = bias_ref[5:6, :Hd]
        b3 = bias_ref[6:7, :Hd]
        b4 = bias_ref[7:8, :L]

        # --- hoisted layer-0 input projection: one (T*Bp,E)x(E,3H) bf16 matmul, f32 acc ---
        gi0_all = jnp.dot(emb_ref[...], wih0,
                          preferred_element_type=jnp.float32) + bias0      # (T*Bp, 3H) f32

        h0 = jnp.zeros((Bp, H), jnp.float32)
        h1 = jnp.zeros((Bp, H), jnp.float32)

        # --- fully unrolled time loop; hidden states carried in vregs ---
        for t in range(T):
            gi0 = gi0_all[t * Bp:(t + 1) * Bp, :]                  # aligned 8-sublane tile

            # layer 0: only the recurrent matmul remains inside the loop
            gh0 = jnp.dot(h0.astype(jnp.bfloat16), whh0,
                          preferred_element_type=jnp.float32)       # (Bp, 3H)
            s0 = jax.nn.sigmoid(gi0[:, :H2] + gh0[:, :H2])          # fused r|z sigmoid
            r0, z0 = s0[:, :H], s0[:, H:]
            n0 = jnp.tanh(gi0[:, H2:] + r0 * (gh0[:, H2:] + bhh0_n))
            h0_new = n0 + z0 * (h0 - n0)

            # layer 1: single merged matmul [h0_new | h1] @ [[Wi_rz,Wi_n,0],[Wh_rz,0,Wh_n]]
            cat = jnp.concatenate([h0_new, h1], axis=-1).astype(jnp.bfloat16)   # (Bp, 2H)
            g1 = jnp.dot(cat, wbig1, preferred_element_type=jnp.float32) + bias1  # (Bp, 4H)
            s1 = jax.nn.sigmoid(g1[:, :H2])
            r1, z1 = s1[:, :H], s1[:, H:]
            n1 = jnp.tanh(g1[:, H2:H3] + r1 * g1[:, H3:])
            h1_new = n1 + z1 * (h1 - n1)

            # pack_padded_sequence semantics: freeze hidden states past each length
            valid = t < lengths                                     # (Bp, 1) bool
            h0 = jnp.where(valid, h0_new, h0)
            h1 = jnp.where(valid, h1_new, h1)

        # --- encoder.linear_out (wout pre-split by layer: no lane concat needed) ---
        rep = (jnp.dot(h0, wout0, preferred_element_type=jnp.float32)
               + jnp.dot(h1, wout1, preferred_element_type=jnp.float32) + bout)   # (Bp, R)

        def lrelu(x):                                               # nn.LeakyReLU, slope 0.01
            return jnp.where(x > 0, x, 0.01 * x)

        x = lrelu(jnp.dot(rep, w1, preferred_element_type=jnp.float32) + b1)
        x = lrelu(jnp.dot(x, w2, preferred_element_type=jnp.float32) + b2)
        x = lrelu(jnp.dot(x, w3, preferred_element_type=jnp.float32) + b3)
        out_ref[...] = jax.nn.sigmoid(
            jnp.dot(x, w4, preferred_element_type=jnp.float32) + b4)

    return kernel


_VMEM = pl.BlockSpec(memory_space=pltpu.MemorySpace.VMEM)


# ------------------------------ JAX wrapper ----------------------------------

def feedback_nn_forward(packed, token_seq, token_length, *, dims):
    E, H, R, Hd, L = dims
    B, T = token_seq.shape
    Bp = _round_up(B, 8)                       # pad batch to the 8-row sublane tile

    # padded rows: token id 0, length 0 -> hidden stays zero; output sliced back to B.
    ids = jnp.zeros((Bp, T), dtype=token_seq.dtype).at[:B].set(token_seq)
    lens = jnp.zeros((Bp,), jnp.int32).at[:B].set(token_length.astype(jnp.int32))

    # Embedding lookup gathered directly in time-major flattened layout (T*Bp, E):
    # row t*Bp + b is token (b, t). bf16 halves the kernel-input DMA bytes; all gate math
    # inside the kernel stays f32.
    ids_tm = jnp.transpose(ids).reshape(T * Bp)
    emb_flat = jnp.take(packed["emb"], ids_tm, axis=0).astype(jnp.bfloat16)   # (T*Bp, E)
    len2d = lens.reshape(Bp, 1)

    gru_offs, _ = _gru_slab_layout(E, H)
    head_offs, _ = _head_slab_layout(H, R, Hd)
    kernel = make_feedback_kernel(E, H, R, Hd, L, T, Bp, gru_offs, head_offs)

    out = pl.pallas_call(
        kernel,
        out_shape=jax.ShapeDtypeStruct((Bp, L), jnp.float32),
        in_specs=[_VMEM] * 5,
        out_specs=_VMEM,
    )(emb_flat, len2d, packed["gru_w"], packed["head_w"], packed["bias"])
    return out[:B]


# --------------------------- parameter creation ------------------------------

def init_raw_params(key, vocab_size, num_labels, rep_size, embedding_dim, hidden_dim):
    """Raw (f32, pre-transposed (in, out)) parameters, used by the pure-JAX reference."""
    ks = iter(jax.random.split(key, 24))

    def uniform(shape, fan_in):
        bound = float(fan_in) ** -0.5
        return jax.random.uniform(next(ks), shape, jnp.float32, -bound, bound)

    E, H, R, Hd, L = embedding_dim, hidden_dim, rep_size, hidden_dim, num_labels
    return {
        "emb": jax.random.normal(next(ks), (vocab_size, E), jnp.float32),
        # GRU layer 0
        "wih0_t": uniform((E, 3 * H), H), "whh0_t": uniform((H, 3 * H), H),
        "bih0": uniform((3 * H,), H), "bhh0": uniform((3 * H,), H),
        # GRU layer 1
        "wih1_t": uniform((H, 3 * H), H), "whh1_t": uniform((H, 3 * H), H),
        "bih1": uniform((3 * H,), H), "bhh1": uniform((3 * H,), H),
        # encoder.linear_out : (num_layers*H) -> rep_size
        "wout_t": uniform((2 * H, R), 2 * H), "bout": uniform((R,), 2 * H),
        # LabelPredictor
        "w1_t": uniform((R, Hd), R), "b1": uniform((Hd,), R),
        "w2_t": uniform((Hd, Hd), Hd), "b2": uniform((Hd,), Hd),
        "w3_t": uniform((Hd, Hd), Hd), "b3": uniform((Hd,), Hd),
        "w4_t": uniform((Hd, L), Hd), "b4": uniform((L,), Hd),
    }


def pack_params(raw, embedding_dim, hidden_dim, rep_size, num_labels):
    """Pack the 20 parameter tensors into 3 kernel slabs (+ the embedding table)."""
    E, H = embedding_dim, hidden_dim
    R, Hd, L = rep_size, hidden_dim, num_labels
    H2, H3, H4 = 2 * H, 3 * H, 4 * H

    # --- GRU weight slab (bf16): wih0_t | whh0_t | merged layer-1 weight ---
    (o_ih0, o_hh0, o_big), gru_rows = _gru_slab_layout(E, H)
    gru = np.zeros((gru_rows, H4), np.float32)
    gru[o_ih0:o_ih0 + E, :H3] = np.asarray(raw["wih0_t"])
    gru[o_hh0:o_hh0 + H, :H3] = np.asarray(raw["whh0_t"])
    wih1 = np.asarray(raw["wih1_t"])
    whh1 = np.asarray(raw["whh1_t"])
    # merged layer-1 weight, columns = [ r,z (input+hidden) | gi_n (input only) | gh_n (hidden only) ]
    gru[o_big:o_big + H, :H2] = wih1[:, :H2]
    gru[o_big + H:o_big + H2, :H2] = whh1[:, :H2]
    gru[o_big:o_big + H, H2:H3] = wih1[:, H2:]
    gru[o_big + H:o_big + H2, H3:H4] = whh1[:, H2:]

    # --- head weight slab (f32): wout (split by layer) + 4 MLP layers ---
    (o0, o1, ow1, ow2, ow3, ow4), head_rows = _head_slab_layout(H, R, Hd)
    Wh = max(R, Hd, L)
    head = np.zeros((head_rows, Wh), np.float32)
    wout = np.asarray(raw["wout_t"])
    head[o0:o0 + H, :R] = wout[:H]          # h0 (layer-0 hidden) half
    head[o1:o1 + H, :R] = wout[H:]          # h1 (layer-1 hidden) half
    head[ow1:ow1 + R, :Hd] = np.asarray(raw["w1_t"])
    head[ow2:ow2 + Hd, :Hd] = np.asarray(raw["w2_t"])
    head[ow3:ow3 + Hd, :Hd] = np.asarray(raw["w3_t"])
    head[ow4:ow4 + Hd, :L] = np.asarray(raw["w4_t"])

    # --- bias slab (f32, one bias per row, exactly one (8,128)-ish tile) ---
    Bw = max(H4, Hd, R, L)
    bias = np.zeros((8, Bw), np.float32)
    bih0 = np.asarray(raw["bih0"]); bhh0 = np.asarray(raw["bhh0"])
    bih1 = np.asarray(raw["bih1"]); bhh1 = np.asarray(raw["bhh1"])
    bias[0, :H3] = bih0
    bias[0, :H2] += bhh0[:H2]               # fold bhh0 r/z into the hoisted projection bias
    bias[1, :H2] = bih1[:H2] + bhh1[:H2]    # merged layer-1 bias: r/z folded
    bias[1, H2:H3] = bih1[H2:]              #   gi_n bias
    bias[1, H3:H4] = bhh1[H2:]              #   gh_n bias (multiplied by r)
    bias[2, :H] = bhh0[H2:]                 # layer-0 n-gate recurrent bias
    bias[3, :R] = np.asarray(raw["bout"])
    bias[4, :Hd] = np.asarray(raw["b1"])
    bias[5, :Hd] = np.asarray(raw["b2"])
    bias[6, :Hd] = np.asarray(raw["b3"])
    bias[7, :L] = np.asarray(raw["b4"])

    return {
        "emb": raw["emb"],
        "gru_w": jnp.asarray(gru, dtype=jnp.bfloat16),
        "head_w": jnp.asarray(head),
        "bias": jnp.asarray(bias),
    }


# ---------------------------- pure-JAX reference -----------------------------

def reference_forward(raw, token_seq, token_length):
    B, T = token_seq.shape
    H = raw["whh0_t"].shape[0]
    emb = jnp.take(raw["emb"], token_seq, axis=0)                 # (B, T, E) f32
    lengths = token_length.astype(jnp.int32)

    def cell(x, h, wih_t, whh_t, bih, bhh):
        gi = x @ wih_t + bih
        gh = h @ whh_t + bhh
        r = jax.nn.sigmoid(gi[:, :H] + gh[:, :H])
        z = jax.nn.sigmoid(gi[:, H:2 * H] + gh[:, H:2 * H])
        n = jnp.tanh(gi[:, 2 * H:] + r * gh[:, 2 * H:])
        return (1.0 - z) * n + z * h

    h0 = jnp.zeros((B, H), jnp.float32)
    h1 = jnp.zeros((B, H), jnp.float32)
    for t in range(T):
        valid = (t < lengths)[:, None]
        h0n = cell(emb[:, t, :], h0, raw["wih0_t"], raw["whh0_t"], raw["bih0"], raw["bhh0"])
        h1n = cell(h0n, h1, raw["wih1_t"], raw["whh1_t"], raw["bih1"], raw["bhh1"])
        h0 = jnp.where(valid, h0n, h0)
        h1 = jnp.where(valid, h1n, h1)

    hcat = jnp.concatenate([h0, h1], axis=-1)
    rep = hcat @ raw["wout_t"] + raw["bout"]

    def lrelu(x):
        return jnp.where(x > 0, x, 0.01 * x)

    x = lrelu(rep @ raw["w1_t"] + raw["b1"])
    x = lrelu(x @ raw["w2_t"] + raw["b2"])
    x = lrelu(x @ raw["w3_t"] + raw["b3"])
    return jax.nn.sigmoid(x @ raw["w4_t"] + raw["b4"])


# ---------------------------------- main -------------------------------------

if __name__ == "__main__":
    vocab_size = 50
    num_labels = 6
    rep_size = 16
    embedding_dim = 32
    hidden_dim = 32
    B, T = 2, 8

    key = jax.random.PRNGKey(0)
    kp, kseq = jax.random.split(key, 2)
    raw = init_raw_params(kp, vocab_size, num_labels, rep_size, embedding_dim, hidden_dim)
    packed = pack_params(raw, embedding_dim, hidden_dim, rep_size, num_labels)
    dims = (embedding_dim, hidden_dim, rep_size, hidden_dim, num_labels)

    token_seq = jax.random.randint(kseq, (B, T), 0, vocab_size, dtype=jnp.int32)
    token_length = jnp.array([T, T - 3], dtype=jnp.int32)     # padded batch, varying lengths

    fwd = jax.jit(feedback_nn_forward, static_argnames=("dims",))
    out = jax.block_until_ready(fwd(packed, token_seq, token_length, dims=dims))

    ref = jax.block_until_ready(reference_forward(raw, token_seq, token_length))
    # bf16 matmul operands on the 8-step recurrence introduce ~1e-3 level deviations from
    # the f32 reference; outputs are post-sigmoid probabilities in [0, 1].
    np.testing.assert_allclose(np.asarray(out), np.asarray(ref), atol=5e-3, rtol=5e-3)

    assert out.shape == (B, num_labels)
    print("KERNEL_OK")
</pallas_src>

<mosaic_0001>
module attributes {stable_mosaic.version = 11 : i64} {
  func.func @kernel(%arg0: memref<64x32xbf16, #tpu.memory_space<vmem>>, %arg1: memref<8x1xi32, #tpu.memory_space<vmem>>, %arg2: memref<128x128xbf16, #tpu.memory_space<vmem>>, %arg3: memref<176x32xf32, #tpu.memory_space<vmem>>, %arg4: memref<8x128xf32, #tpu.memory_space<vmem>>, %arg5: memref<8x6xf32, #tpu.memory_space<vmem>>) attributes {dimension_semantics = [], scalar_prefetch = 0 : i64, scratch_operands = 0 : i64, tpu.core_type = #tpu.core_type<tc>} {
    %c0 = arith.constant 0 : index
    %c0_0 = arith.constant 0 : index
    %0 = vector.load %arg1[%c0, %c0_0] : memref<8x1xi32, #tpu.memory_space<vmem>>, vector<8x1xi32>
    %c0_1 = arith.constant 0 : index
    %c0_2 = arith.constant 0 : index
    %1 = vector.load %arg2[%c0_1, %c0_2] : memref<128x128xbf16, #tpu.memory_space<vmem>>, vector<32x96xbf16>
    %c32 = arith.constant 32 : index
    %c0_3 = arith.constant 0 : index
    %2 = vector.load %arg2[%c32, %c0_3] : memref<128x128xbf16, #tpu.memory_space<vmem>>, vector<32x96xbf16>
    %c64 = arith.constant 64 : index
    %c0_4 = arith.constant 0 : index
    %3 = vector.load %arg2[%c64, %c0_4] : memref<128x128xbf16, #tpu.memory_space<vmem>>, vector<64x128xbf16>
    %c0_5 = arith.constant 0 : index
    %c0_6 = arith.constant 0 : index
    %4 = vector.load %arg3[%c0_5, %c0_6] : memref<176x32xf32, #tpu.memory_space<vmem>>, vector<32x16xf32>
    %c32_7 = arith.constant 32 : index
    %c0_8 = arith.constant 0 : index
    %5 = vector.load %arg3[%c32_7, %c0_8] : memref<176x32xf32, #tpu.memory_space<vmem>>, vector<32x16xf32>
    %c64_9 = arith.constant 64 : index
    %c0_10 = arith.constant 0 : index
    %6 = vector.load %arg3[%c64_9, %c0_10] : memref<176x32xf32, #tpu.memory_space<vmem>>, vector<16x32xf32>
    %c80 = arith.constant 80 : index
    %c0_11 = arith.constant 0 : index
    %7 = vector.load %arg3[%c80, %c0_11] : memref<176x32xf32, #tpu.memory_space<vmem>>, vector<32x32xf32>
    %c112 = arith.constant 112 : index
    %c0_12 = arith.constant 0 : index
    %8 = vector.load %arg3[%c112, %c0_12] : memref<176x32xf32, #tpu.memory_space<vmem>>, vector<32x32xf32>
    %c144 = arith.constant 144 : index
    %c0_13 = arith.constant 0 : index
    %9 = vector.load %arg3[%c144, %c0_13] : memref<176x32xf32, #tpu.memory_space<vmem>>, vector<32x6xf32>
    %c0_14 = arith.constant 0 : index
    %c0_15 = arith.constant 0 : index
    %10 = vector.load %arg4[%c0_14, %c0_15] : memref<8x128xf32, #tpu.memory_space<vmem>>, vector<1x96xf32>
    %c1 = arith.constant 1 : index
    %c0_16 = arith.constant 0 : index
    %11 = vector.load %arg4[%c1, %c0_16] : memref<8x128xf32, #tpu.memory_space<vmem>>, vector<1x128xf32>
    %c2 = arith.constant 2 : index
    %c0_17 = arith.constant 0 : index
    %12 = vector.load %arg4[%c2, %c0_17] : memref<8x128xf32, #tpu.memory_space<vmem>>, vector<1x32xf32>
    %c3 = arith.constant 3 : index
    %c0_18 = arith.constant 0 : index
    %13 = vector.load %arg4[%c3, %c0_18] : memref<8x128xf32, #tpu.memory_space<vmem>>, vector<1x16xf32>
    %c4 = arith.constant 4 : index
    %c0_19 = arith.constant 0 : index
    %14 = vector.load %arg4[%c4, %c0_19] : memref<8x128xf32, #tpu.memory_space<vmem>>, vector<1x32xf32>
    %c5 = arith.constant 5 : index
    %c0_20 = arith.constant 0 : index
    %15 = vector.load %arg4[%c5, %c0_20] : memref<8x128xf32, #tpu.memory_space<vmem>>, vector<1x32xf32>
    %c6 = arith.constant 6 : index
    %c0_21 = arith.constant 0 : index
    %16 = vector.load %arg4[%c6, %c0_21] : memref<8x128xf32, #tpu.memory_space<vmem>>, vector<1x32xf32>
    %c7 = arith.constant 7 : index
    %c0_22 = arith.constant 0 : index
    %17 = vector.load %arg4[%c7, %c0_22] : memref<8x128xf32, #tpu.memory_space<vmem>>, vector<1x6xf32>
    %c0_23 = arith.constant 0 : index
    %c0_24 = arith.constant 0 : index
    %18 = vector.load %arg0[%c0_23, %c0_24] : memref<64x32xbf16, #tpu.memory_space<vmem>>, vector<64x32xbf16>
    %cst = arith.constant dense<0.000000e+00> : vector<64x96xf32>
    %19 = tpu.matmul %18, %1, %cst {dimension_numbers = #tpu.dot_dimension_numbers<[1], [0], [0], [1], [0, 0, 1, 1], [], []>} : vector<64x32xbf16>, vector<32x96xbf16>, vector<64x96xf32> -> vector<64x96xf32>
    %20 = vector.broadcast %10 : vector<1x96xf32> to vector<64x96xf32>
    %21 = arith.addf %19, %20 : vector<64x96xf32>
    %cst_25 = arith.constant 0.000000e+00 : f32
    %22 = vector.broadcast %cst_25 : f32 to vector<8x32xf32>
    %cst_26 = arith.constant 0.000000e+00 : f32
    %23 = vector.broadcast %cst_26 : f32 to vector<8x32xf32>
    %24 = vector.extract_strided_slice %21 {offsets = [0, 0], sizes = [8, 96], strides = [1, 1]} : vector<64x96xf32> to vector<8x96xf32>
    %25 = arith.truncf %22 : vector<8x32xf32> to vector<8x32xbf16>
    %cst_27 = arith.constant dense<0.000000e+00> : vector<8x96xf32>
    %26 = tpu.matmul %25, %2, %cst_27 {dimension_numbers = #tpu.dot_dimension_numbers<[1], [0], [0], [1], [0, 0, 1, 1], [], []>} : vector<8x32xbf16>, vector<32x96xbf16>, vector<8x96xf32> -> vector<8x96xf32>
    %27 = vector.extract_strided_slice %24 {offsets = [0, 0], sizes = [8, 64], strides = [1, 1]} : vector<8x96xf32> to vector<8x64xf32>
    %28 = vector.extract_strided_slice %26 {offsets = [0, 0], sizes = [8, 64], strides = [1, 1]} : vector<8x96xf32> to vector<8x64xf32>
    %29 = arith.addf %27, %28 : vector<8x64xf32>
    %30 = arith.negf %29 : vector<8x64xf32>
    %31 = math.exp %30 : vector<8x64xf32>
    %cst_28 = arith.constant 1.000000e+00 : f32
    %32 = vector.broadcast %cst_28 : f32 to vector<8x64xf32>
    %33 = arith.addf %32, %31 : vector<8x64xf32>
    %34 = arith.divf %32, %33 : vector<8x64xf32>
    %35 = vector.extract_strided_slice %34 {offsets = [0, 0], sizes = [8, 32], strides = [1, 1]} : vector<8x64xf32> to vector<8x32xf32>
    %36 = vector.extract_strided_slice %34 {offsets = [0, 32], sizes = [8, 32], strides = [1, 1]} : vector<8x64xf32> to vector<8x32xf32>
    %37 = vector.extract_strided_slice %24 {offsets = [0, 64], sizes = [8, 32], strides = [1, 1]} : vector<8x96xf32> to vector<8x32xf32>
    %38 = vector.extract_strided_slice %26 {offsets = [0, 64], sizes = [8, 32], strides = [1, 1]} : vector<8x96xf32> to vector<8x32xf32>
    %39 = vector.broadcast %12 : vector<1x32xf32> to vector<8x32xf32>
    %40 = arith.addf %38, %39 : vector<8x32xf32>
    %41 = arith.mulf %35, %40 : vector<8x32xf32>
    %42 = arith.addf %37, %41 : vector<8x32xf32>
    %43 = math.tanh %42 : vector<8x32xf32>
    %44 = arith.subf %22, %43 : vector<8x32xf32>
    %45 = arith.mulf %36, %44 : vector<8x32xf32>
    %46 = arith.addf %43, %45 : vector<8x32xf32>
    %47 = tpu.concatenate %46, %23 in 1 : vector<8x32xf32>, vector<8x32xf32> -> vector<8x64xf32>
    %48 = arith.truncf %47 : vector<8x64xf32> to vector<8x64xbf16>
    %cst_29 = arith.constant dense<0.000000e+00> : vector<8x128xf32>
    %49 = tpu.matmul %48, %3, %cst_29 {dimension_numbers = #tpu.dot_dimension_numbers<[1], [0], [0], [1], [0, 0, 1, 1], [], []>} : vector<8x64xbf16>, vector<64x128xbf16>, vector<8x128xf32> -> vector<8x128xf32>
    %50 = vector.broadcast %11 : vector<1x128xf32> to vector<8x128xf32>
    %51 = arith.addf %49, %50 : vector<8x128xf32>
    %52 = vector.extract_strided_slice %51 {offsets = [0, 0], sizes = [8, 64], strides = [1, 1]} : vector<8x128xf32> to vector<8x64xf32>
    %53 = arith.negf %52 : vector<8x64xf32>
    %54 = math.exp %53 : vector<8x64xf32>
    %cst_30 = arith.constant 1.000000e+00 : f32
    %55 = vector.broadcast %cst_30 : f32 to vector<8x64xf32>
    %56 = arith.addf %55, %54 : vector<8x64xf32>
    %57 = arith.divf %55, %56 : vector<8x64xf32>
    %58 = vector.extract_strided_slice %57 {offsets = [0, 0], sizes = [8, 32], strides = [1, 1]} : vector<8x64xf32> to vector<8x32xf32>
    %59 = vector.extract_strided_slice %57 {offsets = [0, 32], sizes = [8, 32], strides = [1, 1]} : vector<8x64xf32> to vector<8x32xf32>
    %60 = vector.extract_strided_slice %51 {offsets = [0, 64], sizes = [8, 32], strides = [1, 1]} : vector<8x128xf32> to vector<8x32xf32>
    %61 = vector.extract_strided_slice %51 {offsets = [0, 96], sizes = [8, 32], strides = [1, 1]} : vector<8x128xf32> to vector<8x32xf32>
    %62 = arith.mulf %58, %61 : vector<8x32xf32>
    %63 = arith.addf %60, %62 : vector<8x32xf32>
    %64 = math.tanh %63 : vector<8x32xf32>
    %65 = arith.subf %23, %64 : vector<8x32xf32>
    %66 = arith.mulf %59, %65 : vector<8x32xf32>
    %67 = arith.addf %64, %66 : vector<8x32xf32>
    %c0_i32 = arith.constant 0 : i32
    %68 = vector.broadcast %c0_i32 : i32 to vector<8x1xi32>
    %69 = arith.cmpi sgt, %0, %68 : vector<8x1xi32>
    %70 = vector.shape_cast %69 : vector<8x1xi1> to vector<8x1xi1>
    %71 = vector.broadcast %70 : vector<8x1xi1> to vector<8x32xi1>
    %72 = arith.select %71, %46, %22 : vector<8x32xi1>, vector<8x32xf32>
    %73 = vector.shape_cast %69 : vector<8x1xi1> to vector<8x1xi1>
    %74 = vector.broadcast %73 : vector<8x1xi1> to vector<8x32xi1>
    %75 = arith.select %74, %67, %23 : vector<8x32xi1>, vector<8x32xf32>
    %76 = vector.extract_strided_slice %21 {offsets = [8, 0], sizes = [8, 96], strides = [1, 1]} : vector<64x96xf32> to vector<8x96xf32>
    %77 = arith.truncf %72 : vector<8x32xf32> to vector<8x32xbf16>
    %cst_31 = arith.constant dense<0.000000e+00> : vector<8x96xf32>
    %78 = tpu.matmul %77, %2, %cst_31 {dimension_numbers = #tpu.dot_dimension_numbers<[1], [0], [0], [1], [0, 0, 1, 1], [], []>} : vector<8x32xbf16>, vector<32x96xbf16>, vector<8x96xf32> -> vector<8x96xf32>
    %79 = vector.extract_strided_slice %76 {offsets = [0, 0], sizes = [8, 64], strides = [1, 1]} : vector<8x96xf32> to vector<8x64xf32>
    %80 = vector.extract_strided_slice %78 {offsets = [0, 0], sizes = [8, 64], strides = [1, 1]} : vector<8x96xf32> to vector<8x64xf32>
    %81 = arith.addf %79, %80 : vector<8x64xf32>
    %82 = arith.negf %81 : vector<8x64xf32>
    %83 = math.exp %82 : vector<8x64xf32>
    %cst_32 = arith.constant 1.000000e+00 : f32
    %84 = vector.broadcast %cst_32 : f32 to vector<8x64xf32>
    %85 = arith.addf %84, %83 : vector<8x64xf32>
    %86 = arith.divf %84, %85 : vector<8x64xf32>
    %87 = vector.extract_strided_slice %86 {offsets = [0, 0], sizes = [8, 32], strides = [1, 1]} : vector<8x64xf32> to vector<8x32xf32>
    %88 = vector.extract_strided_slice %86 {offsets = [0, 32], sizes = [8, 32], strides = [1, 1]} : vector<8x64xf32> to vector<8x32xf32>
    %89 = vector.extract_strided_slice %76 {offsets = [0, 64], sizes = [8, 32], strides = [1, 1]} : vector<8x96xf32> to vector<8x32xf32>
    %90 = vector.extract_strided_slice %78 {offsets = [0, 64], sizes = [8, 32], strides = [1, 1]} : vector<8x96xf32> to vector<8x32xf32>
    %91 = vector.broadcast %12 : vector<1x32xf32> to vector<8x32xf32>
    %92 = arith.addf %90, %91 : vector<8x32xf32>
    %93 = arith.mulf %87, %92 : vector<8x32xf32>
    %94 = arith.addf %89, %93 : vector<8x32xf32>
    %95 = math.tanh %94 : vector<8x32xf32>
    %96 = arith.subf %72, %95 : vector<8x32xf32>
    %97 = arith.mulf %88, %96 : vector<8x32xf32>
    %98 = arith.addf %95, %97 : vector<8x32xf32>
    %99 = tpu.concatenate %98, %75 in 1 : vector<8x32xf32>, vector<8x32xf32> -> vector<8x64xf32>
    %100 = arith.truncf %99 : vector<8x64xf32> to vector<8x64xbf16>
    %cst_33 = arith.constant dense<0.000000e+00> : vector<8x128xf32>
    %101 = tpu.matmul %100, %3, %cst_33 {dimension_numbers = #tpu.dot_dimension_numbers<[1], [0], [0], [1], [0, 0, 1, 1], [], []>} : vector<8x64xbf16>, vector<64x128xbf16>, vector<8x128xf32> -> vector<8x128xf32>
    %102 = vector.broadcast %11 : vector<1x128xf32> to vector<8x128xf32>
    %103 = arith.addf %101, %102 : vector<8x128xf32>
    %104 = vector.extract_strided_slice %103 {offsets = [0, 0], sizes = [8, 64], strides = [1, 1]} : vector<8x128xf32> to vector<8x64xf32>
    %105 = arith.negf %104 : vector<8x64xf32>
    %106 = math.exp %105 : vector<8x64xf32>
    %cst_34 = arith.constant 1.000000e+00 : f32
    %107 = vector.broadcast %cst_34 : f32 to vector<8x64xf32>
    %108 = arith.addf %107, %106 : vector<8x64xf32>
    %109 = arith.divf %107, %108 : vector<8x64xf32>
    %110 = vector.extract_strided_slice %109 {offsets = [0, 0], sizes = [8, 32], strides = [1, 1]} : vector<8x64xf32> to vector<8x32xf32>
    %111 = vector.extract_strided_slice %109 {offsets = [0, 32], sizes = [8, 32], strides = [1, 1]} : vector<8x64xf32> to vector<8x32xf32>
    %112 = vector.extract_strided_slice %103 {offsets = [0, 64], sizes = [8, 32], strides = [1, 1]} : vector<8x128xf32> to vector<8x32xf32>
    %113 = vector.extract_strided_slice %103 {offsets = [0, 96], sizes = [8, 32], strides = [1, 1]} : vector<8x128xf32> to vector<8x32xf32>
    %114 = arith.mulf %110, %113 : vector<8x32xf32>
    %115 = arith.addf %112, %114 : vector<8x32xf32>
    %116 = math.tanh %115 : vector<8x32xf32>
    %117 = arith.subf %75, %116 : vector<8x32xf32>
    %118 = arith.mulf %111, %117 : vector<8x32xf32>
    %119 = arith.addf %116, %118 : vector<8x32xf32>
    %c1_i32 = arith.constant 1 : i32
    %120 = vector.broadcast %c1_i32 : i32 to vector<8x1xi32>
    %121 = arith.cmpi sgt, %0, %120 : vector<8x1xi32>
    %122 = vector.shape_cast %121 : vector<8x1xi1> to vector<8x1xi1>
    %123 = vector.broadcast %122 : vector<8x1xi1> to vector<8x32xi1>
    %124 = arith.select %123, %98, %72 : vector<8x32xi1>, vector<8x32xf32>
    %125 = vector.shape_cast %121 : vector<8x1xi1> to vector<8x1xi1>
    %126 = vector.broadcast %125 : vector<8x1xi1> to vector<8x32xi1>
    %127 = arith.select %126, %119, %75 : vector<8x32xi1>, vector<8x32xf32>
    %128 = vector.extract_strided_slice %21 {offsets = [16, 0], sizes = [8, 96], strides = [1, 1]} : vector<64x96xf32> to vector<8x96xf32>
    %129 = arith.truncf %124 : vector<8x32xf32> to vector<8x32xbf16>
    %cst_35 = arith.constant dense<0.000000e+00> : vector<8x96xf32>
    %130 = tpu.matmul %129, %2, %cst_35 {dimension_numbers = #tpu.dot_dimension_numbers<[1], [0], [0], [1], [0, 0, 1, 1], [], []>} : vector<8x32xbf16>, vector<32x96xbf16>, vector<8x96xf32> -> vector<8x96xf32>
    %131 = vector.extract_strided_slice %128 {offsets = [0, 0], sizes = [8, 64], strides = [1, 1]} : vector<8x96xf32> to vector<8x64xf32>
    %132 = vector.extract_strided_slice %130 {offsets = [0, 0], sizes = [8, 64], strides = [1, 1]} : vector<8x96xf32> to vector<8x64xf32>
    %133 = arith.addf %131, %132 : vector<8x64xf32>
    %134 = arith.negf %133 : vector<8x64xf32>
    %135 = math.exp %134 : vector<8x64xf32>
    %cst_36 = arith.constant 1.000000e+00 : f32
    %136 = vector.broadcast %cst_36 : f32 to vector<8x64xf32>
    %137 = arith.addf %136, %135 : vector<8x64xf32>
    %138 = arith.divf %136, %137 : vector<8x64xf32>
    %139 = vector.extract_strided_slice %138 {offsets = [0, 0], sizes = [8, 32], strides = [1, 1]} : vector<8x64xf32> to vector<8x32xf32>
    %140 = vector.extract_strided_slice %138 {offsets = [0, 32], sizes = [8, 32], strides = [1, 1]} : vector<8x64xf32> to vector<8x32xf32>
    %141 = vector.extract_strided_slice %128 {offsets = [0, 64], sizes = [8, 32], strides = [1, 1]} : vector<8x96xf32> to vector<8x32xf32>
    %142 = vector.extract_strided_slice %130 {offsets = [0, 64], sizes = [8, 32], strides = [1, 1]} : vector<8x96xf32> to vector<8x32xf32>
    %143 = vector.broadcast %12 : vector<1x32xf32> to vector<8x32xf32>
    %144 = arith.addf %142, %143 : vector<8x32xf32>
    %145 = arith.mulf %139, %144 : vector<8x32xf32>
    %146 = arith.addf %141, %145 : vector<8x32xf32>
    %147 = math.tanh %146 : vector<8x32xf32>
    %148 = arith.subf %124, %147 : vector<8x32xf32>
    %149 = arith.mulf %140, %148 : vector<8x32xf32>
    %150 = arith.addf %147, %149 : vector<8x32xf32>
    %151 = tpu.concatenate %150, %127 in 1 : vector<8x32xf32>, vector<8x32xf32> -> vector<8x64xf32>
    %152 = arith.truncf %151 : vector<8x64xf32> to vector<8x64xbf16>
    %cst_37 = arith.constant dense<0.000000e+00> : vector<8x128xf32>
    %153 = tpu.matmul %152, %3, %cst_37 {dimension_numbers = #tpu.dot_dimension_numbers<[1], [0], [0], [1], [0, 0, 1, 1], [], []>} : vector<8x64xbf16>, vector<64x128xbf16>, vector<8x128xf32> -> vector<8x128xf32>
    %154 = vector.broadcast %11 : vector<1x128xf32> to vector<8x128xf32>
    %155 = arith.addf %153, %154 : vector<8x128xf32>
    %156 = vector.extract_strided_slice %155 {offsets = [0, 0], sizes = [8, 64], strides = [1, 1]} : vector<8x128xf32> to vector<8x64xf32>
    %157 = arith.negf %156 : vector<8x64xf32>
    %158 = math.exp %157 : vector<8x64xf32>
    %cst_38 = arith.constant 1.000000e+00 : f32
    %159 = vector.broadcast %cst_38 : f32 to vector<8x64xf32>
    %160 = arith.addf %159, %158 : vector<8x64xf32>
    %161 = arith.divf %159, %160 : vector<8x64xf32>
    %162 = vector.extract_strided_slice %161 {offsets = [0, 0], sizes = [8, 32], strides = [1, 1]} : vector<8x64xf32> to vector<8x32xf32>
    %163 = vector.extract_strided_slice %161 {offsets = [0, 32], sizes = [8, 32], strides = [1, 1]} : vector<8x64xf32> to vector<8x32xf32>
    %164 = vector.extract_strided_slice %155 {offsets = [0, 64], sizes = [8, 32], strides = [1, 1]} : vector<8x128xf32> to vector<8x32xf32>
    %165 = vector.extract_strided_slice %155 {offsets = [0, 96], sizes = [8, 32], strides = [1, 1]} : vector<8x128xf32> to vector<8x32xf32>
    %166 = arith.mulf %162, %165 : vector<8x32xf32>
    %167 = arith.addf %164, %166 : vector<8x32xf32>
    %168 = math.tanh %167 : vector<8x32xf32>
    %169 = arith.subf %127, %168 : vector<8x32xf32>
    %170 = arith.mulf %163, %169 : vector<8x32xf32>
    %171 = arith.addf %168, %170 : vector<8x32xf32>
    %c2_i32 = arith.constant 2 : i32
    %172 = vector.broadcast %c2_i32 : i32 to vector<8x1xi32>
    %173 = arith.cmpi sgt, %0, %172 : vector<8x1xi32>
    %174 = vector.shape_cast %173 : vector<8x1xi1> to vector<8x1xi1>
    %175 = vector.broadcast %174 : vector<8x1xi1> to vector<8x32xi1>
    %176 = arith.select %175, %150, %124 : vector<8x32xi1>, vector<8x32xf32>
    %177 = vector.shape_cast %173 : vector<8x1xi1> to vector<8x1xi1>
    %178 = vector.broadcast %177 : vector<8x1xi1> to vector<8x32xi1>
    %179 = arith.select %178, %171, %127 : vector<8x32xi1>, vector<8x32xf32>
    %180 = vector.extract_strided_slice %21 {offsets = [24, 0], sizes = [8, 96], strides = [1, 1]} : vector<64x96xf32> to vector<8x96xf32>
    %181 = arith.truncf %176 : vector<8x32xf32> to vector<8x32xbf16>
    %cst_39 = arith.constant dense<0.000000e+00> : vector<8x96xf32>
    %182 = tpu.matmul %181, %2, %cst_39 {dimension_numbers = #tpu.dot_dimension_numbers<[1], [0], [0], [1], [0, 0, 1, 1], [], []>} : vector<8x32xbf16>, vector<32x96xbf16>, vector<8x96xf32> -> vector<8x96xf32>
    %183 = vector.extract_strided_slice %180 {offsets = [0, 0], sizes = [8, 64], strides = [1, 1]} : vector<8x96xf32> to vector<8x64xf32>
    %184 = vector.extract_strided_slice %182 {offsets = [0, 0], sizes = [8, 64], strides = [1, 1]} : vector<8x96xf32> to vector<8x64xf32>
    %185 = arith.addf %183, %184 : vector<8x64xf32>
    %186 = arith.negf %185 : vector<8x64xf32>
    %187 = math.exp %186 : vector<8x64xf32>
    %cst_40 = arith.constant 1.000000e+00 : f32
    %188 = vector.broadcast %cst_40 : f32 to vector<8x64xf32>
    %189 = arith.addf %188, %187 : vector<8x64xf32>
    %190 = arith.divf %188, %189 : vector<8x64xf32>
    %191 = vector.extract_strided_slice %190 {offsets = [0, 0], sizes = [8, 32], strides = [1, 1]} : vector<8x64xf32> to vector<8x32xf32>
    %192 = vector.extract_strided_slice %190 {offsets = [0, 32], sizes = [8, 32], strides = [1, 1]} : vector<8x64xf32> to vector<8x32xf32>
    %193 = vector.extract_strided_slice %180 {offsets = [0, 64], sizes = [8, 32], strides = [1, 1]} : vector<8x96xf32> to vector<8x32xf32>
    %194 = vector.extract_strided_slice %182 {offsets = [0, 64], sizes = [8, 32], strides = [1, 1]} : vector<8x96xf32> to vector<8x32xf32>
    %195 = vector.broadcast %12 : vector<1x32xf32> to vector<8x32xf32>
    %196 = arith.addf %194, %195 : vector<8x32xf32>
    %197 = arith.mulf %191, %196 : vector<8x32xf32>
    %198 = arith.addf %193, %197 : vector<8x32xf32>
    %199 = math.tanh %198 : vector<8x32xf32>
    %200 = arith.subf %176, %199 : vector<8x32xf32>
    %201 = arith.mulf %192, %200 : vector<8x32xf32>
    %202 = arith.addf %199, %201 : vector<8x32xf32>
    %203 = tpu.concatenate %202, %179 in 1 : vector<8x32xf32>, vector<8x32xf32> -> vector<8x64xf32>
    %204 = arith.truncf %203 : vector<8x64xf32> to vector<8x64xbf16>
    %cst_41 = arith.constant dense<0.000000e+00> : vector<8x128xf32>
    %205 = tpu.matmul %204, %3, %cst_41 {dimension_numbers = #tpu.dot_dimension_numbers<[1], [0], [0], [1], [0, 0, 1, 1], [], []>} : vector<8x64xbf16>, vector<64x128xbf16>, vector<8x128xf32> -> vector<8x128xf32>
    %206 = vector.broadcast %11 : vector<1x128xf32> to vector<8x128xf32>
    %207 = arith.addf %205, %206 : vector<8x128xf32>
    %208 = vector.extract_strided_slice %207 {offsets = [0, 0], sizes = [8, 64], strides = [1, 1]} : vector<8x128xf32> to vector<8x64xf32>
    %209 = arith.negf %208 : vector<8x64xf32>
    %210 = math.exp %209 : vector<8x64xf32>
    %cst_42 = arith.constant 1.000000e+00 : f32
    %211 = vector.broadcast %cst_42 : f32 to vector<8x64xf32>
    %212 = arith.addf %211, %210 : vector<8x64xf32>
    %213 = arith.divf %211, %212 : vector<8x64xf32>
    %214 = vector.extract_strided_slice %213 {offsets = [0, 0], sizes = [8, 32], strides = [1, 1]} : vector<8x64xf32> to vector<8x32xf32>
    %215 = vector.extract_strided_slice %213 {offsets = [0, 32], sizes = [8, 32], strides = [1, 1]} : vector<8x64xf32> to vector<8x32xf32>
    %216 = vector.extract_strided_slice %207 {offsets = [0, 64], sizes = [8, 32], strides = [1, 1]} : vector<8x128xf32> to vector<8x32xf32>
    %217 = vector.extract_strided_slice %207 {offsets = [0, 96], sizes = [8, 32], strides = [1, 1]} : vector<8x128xf32> to vector<8x32xf32>
    %218 = arith.mulf %214, %217 : vector<8x32xf32>
    %219 = arith.addf %216, %218 : vector<8x32xf32>
    %220 = math.tanh %219 : vector<8x32xf32>
    %221 = arith.subf %179, %220 : vector<8x32xf32>
    %222 = arith.mulf %215, %221 : vector<8x32xf32>
    %223 = arith.addf %220, %222 : vector<8x32xf32>
    %c3_i32 = arith.constant 3 : i32
    %224 = vector.broadcast %c3_i32 : i32 to vector<8x1xi32>
    %225 = arith.cmpi sgt, %0, %224 : vector<8x1xi32>
    %226 = vector.shape_cast %225 : vector<8x1xi1> to vector<8x1xi1>
    %227 = vector.broadcast %226 : vector<8x1xi1> to vector<8x32xi1>
    %228 = arith.select %227, %202, %176 : vector<8x32xi1>, vector<8x32xf32>
    %229 = vector.shape_cast %225 : vector<8x1xi1> to vector<8x1xi1>
    %230 = vector.broadcast %229 : vector<8x1xi1> to vector<8x32xi1>
    %231 = arith.select %230, %223, %179 : vector<8x32xi1>, vector<8x32xf32>
    %232 = vector.extract_strided_slice %21 {offsets = [32, 0], sizes = [8, 96], strides = [1, 1]} : vector<64x96xf32> to vector<8x96xf32>
    %233 = arith.truncf %228 : vector<8x32xf32> to vector<8x32xbf16>
    %cst_43 = arith.constant dense<0.000000e+00> : vector<8x96xf32>
    %234 = tpu.matmul %233, %2, %cst_43 {dimension_numbers = #tpu.dot_dimension_numbers<[1], [0], [0], [1], [0, 0, 1, 1], [], []>} : vector<8x32xbf16>, vector<32x96xbf16>, vector<8x96xf32> -> vector<8x96xf32>
    %235 = vector.extract_strided_slice %232 {offsets = [0, 0], sizes = [8, 64], strides = [1, 1]} : vector<8x96xf32> to vector<8x64xf32>
    %236 = vector.extract_strided_slice %234 {offsets = [0, 0], sizes = [8, 64], strides = [1, 1]} : vector<8x96xf32> to vector<8x64xf32>
    %237 = arith.addf %235, %236 : vector<8x64xf32>
    %238 = arith.negf %237 : vector<8x64xf32>
    %239 = math.exp %238 : vector<8x64xf32>
    %cst_44 = arith.constant 1.000000e+00 : f32
    %240 = vector.broadcast %cst_44 : f32 to vector<8x64xf32>
    %241 = arith.addf %240, %239 : vector<8x64xf32>
    %242 = arith.divf %240, %241 : vector<8x64xf32>
    %243 = vector.extract_strided_slice %242 {offsets = [0, 0], sizes = [8, 32], strides = [1, 1]} : vector<8x64xf32> to vector<8x32xf32>
    %244 = vector.extract_strided_slice %242 {offsets = [0, 32], sizes = [8, 32], strides = [1, 1]} : vector<8x64xf32> to vector<8x32xf32>
    %245 = vector.extract_strided_slice %232 {offsets = [0, 64], sizes = [8, 32], strides = [1, 1]} : vector<8x96xf32> to vector<8x32xf32>
    %246 = vector.extract_strided_slice %234 {offsets = [0, 64], sizes = [8, 32], strides = [1, 1]} : vector<8x96xf32> to vector<8x32xf32>
    %247 = vector.broadcast %12 : vector<1x32xf32> to vector<8x32xf32>
    %248 = arith.addf %246, %247 : vector<8x32xf32>
    %249 = arith.mulf %243, %248 : vector<8x32xf32>
    %250 = arith.addf %245, %249 : vector<8x32xf32>
    %251 = math.tanh %250 : vector<8x32xf32>
    %252 = arith.subf %228, %251 : vector<8x32xf32>
    %253 = arith.mulf %244, %252 : vector<8x32xf32>
    %254 = arith.addf %251, %253 : vector<8x32xf32>
    %255 = tpu.concatenate %254, %231 in 1 : vector<8x32xf32>, vector<8x32xf32> -> vector<8x64xf32>
    %256 = arith.truncf %255 : vector<8x64xf32> to vector<8x64xbf16>
    %cst_45 = arith.constant dense<0.000000e+00> : vector<8x128xf32>
    %257 = tpu.matmul %256, %3, %cst_45 {dimension_numbers = #tpu.dot_dimension_numbers<[1], [0], [0], [1], [0, 0, 1, 1], [], []>} : vector<8x64xbf16>, vector<64x128xbf16>, vector<8x128xf32> -> vector<8x128xf32>
    %258 = vector.broadcast %11 : vector<1x128xf32> to vector<8x128xf32>
    %259 = arith.addf %257, %258 : vector<8x128xf32>
    %260 = vector.extract_strided_slice %259 {offsets = [0, 0], sizes = [8, 64], strides = [1, 1]} : vector<8x128xf32> to vector<8x64xf32>
    %261 = arith.negf %260 : vector<8x64xf32>
    %262 = math.exp %261 : vector<8x64xf32>
    %cst_46 = arith.constant 1.000000e+00 : f32
    %263 = vector.broadcast %cst_46 : f32 to vector<8x64xf32>
    %264 = arith.addf %263, %262 : vector<8x64xf32>
    %265 = arith.divf %263, %264 : vector<8x64xf32>
    %266 = vector.extract_strided_slice %265 {offsets = [0, 0], sizes = [8, 32], strides = [1, 1]} : vector<8x64xf32> to vector<8x32xf32>
    %267 = vector.extract_strided_slice %265 {offsets = [0, 32], sizes = [8, 32], strides = [1, 1]} : vector<8x64xf32> to vector<8x32xf32>
    %268 = vector.extract_strided_slice %259 {offsets = [0, 64], sizes = [8, 32], strides = [1, 1]} : vector<8x128xf32> to vector<8x32xf32>
    %269 = vector.extract_strided_slice %259 {offsets = [0, 96], sizes = [8, 32], strides = [1, 1]} : vector<8x128xf32> to vector<8x32xf32>
    %270 = arith.mulf %266, %269 : vector<8x32xf32>
    %271 = arith.addf %268, %270 : vector<8x32xf32>
    %272 = math.tanh %271 : vector<8x32xf32>
    %273 = arith.subf %231, %272 : vector<8x32xf32>
    %274 = arith.mulf %267, %273 : vector<8x32xf32>
    %275 = arith.addf %272, %274 : vector<8x32xf32>
    %c4_i32 = arith.constant 4 : i32
    %276 = vector.broadcast %c4_i32 : i32 to vector<8x1xi32>
    %277 = arith.cmpi sgt, %0, %276 : vector<8x1xi32>
    %278 = vector.shape_cast %277 : vector<8x1xi1> to vector<8x1xi1>
    %279 = vector.broadcast %278 : vector<8x1xi1> to vector<8x32xi1>
    %280 = arith.select %279, %254, %228 : vector<8x32xi1>, vector<8x32xf32>
    %281 = vector.shape_cast %277 : vector<8x1xi1> to vector<8x1xi1>
    %282 = vector.broadcast %281 : vector<8x1xi1> to vector<8x32xi1>
    %283 = arith.select %282, %275, %231 : vector<8x32xi1>, vector<8x32xf32>
    %284 = vector.extract_strided_slice %21 {offsets = [40, 0], sizes = [8, 96], strides = [1, 1]} : vector<64x96xf32> to vector<8x96xf32>
    %285 = arith.truncf %280 : vector<8x32xf32> to vector<8x32xbf16>
    %cst_47 = arith.constant dense<0.000000e+00> : vector<8x96xf32>
    %286 = tpu.matmul %285, %2, %cst_47 {dimension_numbers = #tpu.dot_dimension_numbers<[1], [0], [0], [1], [0, 0, 1, 1], [], []>} : vector<8x32xbf16>, vector<32x96xbf16>, vector<8x96xf32> -> vector<8x96xf32>
    %287 = vector.extract_strided_slice %284 {offsets = [0, 0], sizes = [8, 64], strides = [1, 1]} : vector<8x96xf32> to vector<8x64xf32>
    %288 = vector.extract_strided_slice %286 {offsets = [0, 0], sizes = [8, 64], strides = [1, 1]} : vector<8x96xf32> to vector<8x64xf32>
    %289 = arith.addf %287, %288 : vector<8x64xf32>
    %290 = arith.negf %289 : vector<8x64xf32>
    %291 = math.exp %290 : vector<8x64xf32>
    %cst_48 = arith.constant 1.000000e+00 : f32
    %292 = vector.broadcast %cst_48 : f32 to vector<8x64xf32>
    %293 = arith.addf %292, %291 : vector<8x64xf32>
    %294 = arith.divf %292, %293 : vector<8x64xf32>
    %295 = vector.extract_strided_slice %294 {offsets = [0, 0], sizes = [8, 32], strides = [1, 1]} : vector<8x64xf32> to vector<8x32xf32>
    %296 = vector.extract_strided_slice %294 {offsets = [0, 32], sizes = [8, 32], strides = [1, 1]} : vector<8x64xf32> to vector<8x32xf32>
    %297 = vector.extract_strided_slice %284 {offsets = [0, 64], sizes = [8, 32], strides = [1, 1]} : vector<8x96xf32> to vector<8x32xf32>
    %298 = vector.extract_strided_slice %286 {offsets = [0, 64], sizes = [8, 32], strides = [1, 1]} : vector<8x96xf32> to vector<8x32xf32>
    %299 = vector.broadcast %12 : vector<1x32xf32> to vector<8x32xf32>
    %300 = arith.addf %298, %299 : vector<8x32xf32>
    %301 = arith.mulf %295, %300 : vector<8x32xf32>
    %302 = arith.addf %297, %301 : vector<8x32xf32>
    %303 = math.tanh %302 : vector<8x32xf32>
    %304 = arith.subf %280, %303 : vector<8x32xf32>
    %305 = arith.mulf %296, %304 : vector<8x32xf32>
    %306 = arith.addf %303, %305 : vector<8x32xf32>
    %307 = tpu.concatenate %306, %283 in 1 : vector<8x32xf32>, vector<8x32xf32> -> vector<8x64xf32>
    %308 = arith.truncf %307 : vector<8x64xf32> to vector<8x64xbf16>
    %cst_49 = arith.constant dense<0.000000e+00> : vector<8x128xf32>
    %309 = tpu.matmul %308, %3, %cst_49 {dimension_numbers = #tpu.dot_dimension_numbers<[1], [0], [0], [1], [0, 0, 1, 1], [], []>} : vector<8x64xbf16>, vector<64x128xbf16>, vector<8x128xf32> -> vector<8x128xf32>
    %310 = vector.broadcast %11 : vector<1x128xf32> to vector<8x128xf32>
    %311 = arith.addf %309, %310 : vector<8x128xf32>
    %312 = vector.extract_strided_slice %311 {offsets = [0, 0], sizes = [8, 64], strides = [1, 1]} : vector<8x128xf32> to vector<8x64xf32>
    %313 = arith.negf %312 : vector<8x64xf32>
    %314 = math.exp %313 : vector<8x64xf32>
    %cst_50 = arith.constant 1.000000e+00 : f32
    %315 = vector.broadcast %cst_50 : f32 to vector<8x64xf32>
    %316 = arith.addf %315, %314 : vector<8x64xf32>
    %317 = arith.divf %315, %316 : vector<8x64xf32>
    %318 = vector.extract_strided_slice %317 {offsets = [0, 0], sizes = [8, 32], strides = [1, 1]} : vector<8x64xf32> to vector<8x32xf32>
    %319 = vector.extract_strided_slice %317 {offsets = [0, 32], sizes = [8, 32], strides = [1, 1]} : vector<8x64xf32> to vector<8x32xf32>
    %320 = vector.extract_strided_slice %311 {offsets = [0, 64], sizes = [8, 32], strides = [1, 1]} : vector<8x128xf32> to vector<8x32xf32>
    %321 = vector.extract_strided_slice %311 {offsets = [0, 96], sizes = [8, 32], strides = [1, 1]} : vector<8x128xf32> to vector<8x32xf32>
    %322 = arith.mulf %318, %321 : vector<8x32xf32>
    %323 = arith.addf %320, %322 : vector<8x32xf32>
    %324 = math.tanh %323 : vector<8x32xf32>
    %325 = arith.subf %283, %324 : vector<8x32xf32>
    %326 = arith.mulf %319, %325 : vector<8x32xf32>
    %327 = arith.addf %324, %326 : vector<8x32xf32>
    %c5_i32 = arith.constant 5 : i32
    %328 = vector.broadcast %c5_i32 : i32 to vector<8x1xi32>
    %329 = arith.cmpi sgt, %0, %328 : vector<8x1xi32>
    %330 = vector.shape_cast %329 : vector<8x1xi1> to vector<8x1xi1>
    %331 = vector.broadcast %330 : vector<8x1xi1> to vector<8x32xi1>
    %332 = arith.select %331, %306, %280 : vector<8x32xi1>, vector<8x32xf32>
    %333 = vector.shape_cast %329 : vector<8x1xi1> to vector<8x1xi1>
    %334 = vector.broadcast %333 : vector<8x1xi1> to vector<8x32xi1>
    %335 = arith.select %334, %327, %283 : vector<8x32xi1>, vector<8x32xf32>
    %336 = vector.extract_strided_slice %21 {offsets = [48, 0], sizes = [8, 96], strides = [1, 1]} : vector<64x96xf32> to vector<8x96xf32>
    %337 = arith.truncf %332 : vector<8x32xf32> to vector<8x32xbf16>
    %cst_51 = arith.constant dense<0.000000e+00> : vector<8x96xf32>
    %338 = tpu.matmul %337, %2, %cst_51 {dimension_numbers = #tpu.dot_dimension_numbers<[1], [0], [0], [1], [0, 0, 1, 1], [], []>} : vector<8x32xbf16>, vector<32x96xbf16>, vector<8x96xf32> -> vector<8x96xf32>
    %339 = vector.extract_strided_slice %336 {offsets = [0, 0], sizes = [8, 64], strides = [1, 1]} : vector<8x96xf32> to vector<8x64xf32>
    %340 = vector.extract_strided_slice %338 {offsets = [0, 0], sizes = [8, 64], strides = [1, 1]} : vector<8x96xf32> to vector<8x64xf32>
    %341 = arith.addf %339, %340 : vector<8x64xf32>
    %342 = arith.negf %341 : vector<8x64xf32>
    %343 = math.exp %342 : vector<8x64xf32>
    %cst_52 = arith.constant 1.000000e+00 : f32
    %344 = vector.broadcast %cst_52 : f32 to vector<8x64xf32>
    %345 = arith.addf %344, %343 : vector<8x64xf32>
    %346 = arith.divf %344, %345 : vector<8x64xf32>
    %347 = vector.extract_strided_slice %346 {offsets = [0, 0], sizes = [8, 32], strides = [1, 1]} : vector<8x64xf32> to vector<8x32xf32>
    %348 = vector.extract_strided_slice %346 {offsets = [0, 32], sizes = [8, 32], strides = [1, 1]} : vector<8x64xf32> to vector<8x32xf32>
    %349 = vector.extract_strided_slice %336 {offsets = [0, 64], sizes = [8, 32], strides = [1, 1]} : vector<8x96xf32> to vector<8x32xf32>
    %350 = vector.extract_strided_slice %338 {offsets = [0, 64], sizes = [8, 32], strides = [1, 1]} : vector<8x96xf32> to vector<8x32xf32>
    %351 = vector.broadcast %12 : vector<1x32xf32> to vector<8x32xf32>
    %352 = arith.addf %350, %351 : vector<8x32xf32>
    %353 = arith.mulf %347, %352 : vector<8x32xf32>
    %354 = arith.addf %349, %353 : vector<8x32xf32>
    %355 = math.tanh %354 : vector<8x32xf32>
    %356 = arith.subf %332, %355 : vector<8x32xf32>
    %357 = arith.mulf %348, %356 : vector<8x32xf32>
    %358 = arith.addf %355, %357 : vector<8x32xf32>
    %359 = tpu.concatenate %358, %335 in 1 : vector<8x32xf32>, vector<8x32xf32> -> vector<8x64xf32>
    %360 = arith.truncf %359 : vector<8x64xf32> to vector<8x64xbf16>
    %cst_53 = arith.constant dense<0.000000e+00> : vector<8x128xf32>
    %361 = tpu.matmul %360, %3, %cst_53 {dimension_numbers = #tpu.dot_dimension_numbers<[1], [0], [0], [1], [0, 0, 1, 1], [], []>} : vector<8x64xbf16>, vector<64x128xbf16>, vector<8x128xf32> -> vector<8x128xf32>
    %362 = vector.broadcast %11 : vector<1x128xf32> to vector<8x128xf32>
    %363 = arith.addf %361, %362 : vector<8x128xf32>
    %364 = vector.extract_strided_slice %363 {offsets = [0, 0], sizes = [8, 64], strides = [1, 1]} : vector<8x128xf32> to vector<8x64xf32>
    %365 = arith.negf %364 : vector<8x64xf32>
    %366 = math.exp %365 : vector<8x64xf32>
    %cst_54 = arith.constant 1.000000e+00 : f32
    %367 = vector.broadcast %cst_54 : f32 to vector<8x64xf32>
    %368 = arith.addf %367, %366 : vector<8x64xf32>
    %369 = arith.divf %367, %368 : vector<8x64xf32>
    %370 = vector.extract_strided_slice %369 {offsets = [0, 0], sizes = [8, 32], strides = [1, 1]} : vector<8x64xf32> to vector<8x32xf32>
    %371 = vector.extract_strided_slice %369 {offsets = [0, 32], sizes = [8, 32], strides = [1, 1]} : vector<8x64xf32> to vector<8x32xf32>
    %372 = vector.extract_strided_slice %363 {offsets = [0, 64], sizes = [8, 32], strides = [1, 1]} : vector<8x128xf32> to vector<8x32xf32>
    %373 = vector.extract_strided_slice %363 {offsets = [0, 96], sizes = [8, 32], strides = [1, 1]} : vector<8x128xf32> to vector<8x32xf32>
    %374 = arith.mulf %370, %373 : vector<8x32xf32>
    %375 = arith.addf %372, %374 : vector<8x32xf32>
    %376 = math.tanh %375 : vector<8x32xf32>
    %377 = arith.subf %335, %376 : vector<8x32xf32>
    %378 = arith.mulf %371, %377 : vector<8x32xf32>
    %379 = arith.addf %376, %378 : vector<8x32xf32>
    %c6_i32 = arith.constant 6 : i32
    %380 = vector.broadcast %c6_i32 : i32 to vector<8x1xi32>
    %381 = arith.cmpi sgt, %0, %380 : vector<8x1xi32>
    %382 = vector.shape_cast %381 : vector<8x1xi1> to vector<8x1xi1>
    %383 = vector.broadcast %382 : vector<8x1xi1> to vector<8x32xi1>
    %384 = arith.select %383, %358, %332 : vector<8x32xi1>, vector<8x32xf32>
    %385 = vector.shape_cast %381 : vector<8x1xi1> to vector<8x1xi1>
    %386 = vector.broadcast %385 : vector<8x1xi1> to vector<8x32xi1>
    %387 = arith.select %386, %379, %335 : vector<8x32xi1>, vector<8x32xf32>
    %388 = vector.extract_strided_slice %21 {offsets = [56, 0], sizes = [8, 96], strides = [1, 1]} : vector<64x96xf32> to vector<8x96xf32>
    %389 = arith.truncf %384 : vector<8x32xf32> to vector<8x32xbf16>
    %cst_55 = arith.constant dense<0.000000e+00> : vector<8x96xf32>
    %390 = tpu.matmul %389, %2, %cst_55 {dimension_numbers = #tpu.dot_dimension_numbers<[1], [0], [0], [1], [0, 0, 1, 1], [], []>} : vector<8x32xbf16>, vector<32x96xbf16>, vector<8x96xf32> -> vector<8x96xf32>
    %391 = vector.extract_strided_slice %388 {offsets = [0, 0], sizes = [8, 64], strides = [1, 1]} : vector<8x96xf32> to vector<8x64xf32>
    %392 = vector.extract_strided_slice %390 {offsets = [0, 0], sizes = [8, 64], strides = [1, 1]} : vector<8x96xf32> to vector<8x64xf32>
    %393 = arith.addf %391, %392 : vector<8x64xf32>
    %394 = arith.negf %393 : vector<8x64xf32>
    %395 = math.exp %394 : vector<8x64xf32>
    %cst_56 = arith.constant 1.000000e+00 : f32
    %396 = vector.broadcast %cst_56 : f32 to vector<8x64xf32>
    %397 = arith.addf %396, %395 : vector<8x64xf32>
    %398 = arith.divf %396, %397 : vector<8x64xf32>
    %399 = vector.extract_strided_slice %398 {offsets = [0, 0], sizes = [8, 32], strides = [1, 1]} : vector<8x64xf32> to vector<8x32xf32>
    %400 = vector.extract_strided_slice %398 {offsets = [0, 32], sizes = [8, 32], strides = [1, 1]} : vector<8x64xf32> to vector<8x32xf32>
    %401 = vector.extract_strided_slice %388 {offsets = [0, 64], sizes = [8, 32], strides = [1, 1]} : vector<8x96xf32> to vector<8x32xf32>
    %402 = vector.extract_strided_slice %390 {offsets = [0, 64], sizes = [8, 32], strides = [1, 1]} : vector<8x96xf32> to vector<8x32xf32>
    %403 = vector.broadcast %12 : vector<1x32xf32> to vector<8x32xf32>
    %404 = arith.addf %402, %403 : vector<8x32xf32>
    %405 = arith.mulf %399, %404 : vector<8x32xf32>
    %406 = arith.addf %401, %405 : vector<8x32xf32>
    %407 = math.tanh %406 : vector<8x32xf32>
    %408 = arith.subf %384, %407 : vector<8x32xf32>
    %409 = arith.mulf %400, %408 : vector<8x32xf32>
    %410 = arith.addf %407, %409 : vector<8x32xf32>
    %411 = tpu.concatenate %410, %387 in 1 : vector<8x32xf32>, vector<8x32xf32> -> vector<8x64xf32>
    %412 = arith.truncf %411 : vector<8x64xf32> to vector<8x64xbf16>
    %cst_57 = arith.constant dense<0.000000e+00> : vector<8x128xf32>
    %413 = tpu.matmul %412, %3, %cst_57 {dimension_numbers = #tpu.dot_dimension_numbers<[1], [0], [0], [1], [0, 0, 1, 1], [], []>} : vector<8x64xbf16>, vector<64x128xbf16>, vector<8x128xf32> -> vector<8x128xf32>
    %414 = vector.broadcast %11 : vector<1x128xf32> to vector<8x128xf32>
    %415 = arith.addf %413, %414 : vector<8x128xf32>
    %416 = vector.extract_strided_slice %415 {offsets = [0, 0], sizes = [8, 64], strides = [1, 1]} : vector<8x128xf32> to vector<8x64xf32>
    %417 = arith.negf %416 : vector<8x64xf32>
    %418 = math.exp %417 : vector<8x64xf32>
    %cst_58 = arith.constant 1.000000e+00 : f32
    %419 = vector.broadcast %cst_58 : f32 to vector<8x64xf32>
    %420 = arith.addf %419, %418 : vector<8x64xf32>
    %421 = arith.divf %419, %420 : vector<8x64xf32>
    %422 = vector.extract_strided_slice %421 {offsets = [0, 0], sizes = [8, 32], strides = [1, 1]} : vector<8x64xf32> to vector<8x32xf32>
    %423 = vector.extract_strided_slice %421 {offsets = [0, 32], sizes = [8, 32], strides = [1, 1]} : vector<8x64xf32> to vector<8x32xf32>
    %424 = vector.extract_strided_slice %415 {offsets = [0, 64], sizes = [8, 32], strides = [1, 1]} : vector<8x128xf32> to vector<8x32xf32>
    %425 = vector.extract_strided_slice %415 {offsets = [0, 96], sizes = [8, 32], strides = [1, 1]} : vector<8x128xf32> to vector<8x32xf32>
    %426 = arith.mulf %422, %425 : vector<8x32xf32>
    %427 = arith.addf %424, %426 : vector<8x32xf32>
    %428 = math.tanh %427 : vector<8x32xf32>
    %429 = arith.subf %387, %428 : vector<8x32xf32>
    %430 = arith.mulf %423, %429 : vector<8x32xf32>
    %431 = arith.addf %428, %430 : vector<8x32xf32>
    %c7_i32 = arith.constant 7 : i32
    %432 = vector.broadcast %c7_i32 : i32 to vector<8x1xi32>
    %433 = arith.cmpi sgt, %0, %432 : vector<8x1xi32>
    %434 = vector.shape_cast %433 : vector<8x1xi1> to vector<8x1xi1>
    %435 = vector.broadcast %434 : vector<8x1xi1> to vector<8x32xi1>
    %436 = arith.select %435, %410, %384 : vector<8x32xi1>, vector<8x32xf32>
    %437 = vector.shape_cast %433 : vector<8x1xi1> to vector<8x1xi1>
    %438 = vector.broadcast %437 : vector<8x1xi1> to vector<8x32xi1>
    %439 = arith.select %438, %431, %387 : vector<8x32xi1>, vector<8x32xf32>
    %cst_59 = arith.constant dense<0.000000e+00> : vector<8x16xf32>
    %440 = tpu.matmul %436, %4, %cst_59 {dimension_numbers = #tpu.dot_dimension_numbers<[1], [0], [0], [1], [0, 0, 1, 1], [], []>} : vector<8x32xf32>, vector<32x16xf32>, vector<8x16xf32> -> vector<8x16xf32>
    %cst_60 = arith.constant dense<0.000000e+00> : vector<8x16xf32>
    %441 = tpu.matmul %439, %5, %cst_60 {dimension_numbers = #tpu.dot_dimension_numbers<[1], [0], [0], [1], [0, 0, 1, 1], [], []>} : vector<8x32xf32>, vector<32x16xf32>, vector<8x16xf32> -> vector<8x16xf32>
    %442 = arith.addf %440, %441 : vector<8x16xf32>
    %443 = vector.broadcast %13 : vector<1x16xf32> to vector<8x16xf32>
    %444 = arith.addf %442, %443 : vector<8x16xf32>
    %cst_61 = arith.constant dense<0.000000e+00> : vector<8x32xf32>
    %445 = tpu.matmul %444, %6, %cst_61 {dimension_numbers = #tpu.dot_dimension_numbers<[1], [0], [0], [1], [0, 0, 1, 1], [], []>} : vector<8x16xf32>, vector<16x32xf32>, vector<8x32xf32> -> vector<8x32xf32>
    %446 = vector.broadcast %14 : vector<1x32xf32> to vector<8x32xf32>
    %447 = arith.addf %445, %446 : vector<8x32xf32>
    %cst_62 = arith.constant 0.000000e+00 : f32
    %448 = vector.broadcast %cst_62 : f32 to vector<8x32xf32>
    %449 = arith.cmpf ogt, %447, %448 : vector<8x32xf32>
    %cst_63 = arith.constant 0.00999999977 : f32
    %450 = vector.broadcast %cst_63 : f32 to vector<8x32xf32>
    %451 = arith.mulf %450, %447 : vector<8x32xf32>
    %452 = arith.select %449, %447, %451 : vector<8x32xi1>, vector<8x32xf32>
    %cst_64 = arith.constant dense<0.000000e+00> : vector<8x32xf32>
    %453 = tpu.matmul %452, %7, %cst_64 {dimension_numbers = #tpu.dot_dimension_numbers<[1], [0], [0], [1], [0, 0, 1, 1], [], []>} : vector<8x32xf32>, vector<32x32xf32>, vector<8x32xf32> -> vector<8x32xf32>
    %454 = vector.broadcast %15 : vector<1x32xf32> to vector<8x32xf32>
    %455 = arith.addf %453, %454 : vector<8x32xf32>
    %cst_65 = arith.constant 0.000000e+00 : f32
    %456 = vector.broadcast %cst_65 : f32 to vector<8x32xf32>
    %457 = arith.cmpf ogt, %455, %456 : vector<8x32xf32>
    %cst_66 = arith.constant 0.00999999977 : f32
    %458 = vector.broadcast %cst_66 : f32 to vector<8x32xf32>
    %459 = arith.mulf %458, %455 : vector<8x32xf32>
    %460 = arith.select %457, %455, %459 : vector<8x32xi1>, vector<8x32xf32>
    %cst_67 = arith.constant dense<0.000000e+00> : vector<8x32xf32>
    %461 = tpu.matmul %460, %8, %cst_67 {dimension_numbers = #tpu.dot_dimension_numbers<[1], [0], [0], [1], [0, 0, 1, 1], [], []>} : vector<8x32xf32>, vector<32x32xf32>, vector<8x32xf32> -> vector<8x32xf32>
    %462 = vector.broadcast %16 : vector<1x32xf32> to vector<8x32xf32>
    %463 = arith.addf %461, %462 : vector<8x32xf32>
    %cst_68 = arith.constant 0.000000e+00 : f32
    %464 = vector.broadcast %cst_68 : f32 to vector<8x32xf32>
    %465 = arith.cmpf ogt, %463, %464 : vector<8x32xf32>
    %cst_69 = arith.constant 0.00999999977 : f32
    %466 = vector.broadcast %cst_69 : f32 to vector<8x32xf32>
    %467 = arith.mulf %466, %463 : vector<8x32xf32>
    %468 = arith.select %465, %463, %467 : vector<8x32xi1>, vector<8x32xf32>
    %cst_70 = arith.constant dense<0.000000e+00> : vector<8x6xf32>
    %469 = tpu.matmul %468, %9, %cst_70 {dimension_numbers = #tpu.dot_dimension_numbers<[1], [0], [0], [1], [0, 0, 1, 1], [], []>} : vector<8x32xf32>, vector<32x6xf32>, vector<8x6xf32> -> vector<8x6xf32>
    %470 = vector.broadcast %17 : vector<1x6xf32> to vector<8x6xf32>
    %471 = arith.addf %469, %470 : vector<8x6xf32>
    %472 = arith.negf %471 : vector<8x6xf32>
    %473 = math.exp %472 : vector<8x6xf32>
    %cst_71 = arith.constant 1.000000e+00 : f32
    %474 = vector.broadcast %cst_71 : f32 to vector<8x6xf32>
    %475 = arith.addf %474, %473 : vector<8x6xf32>
    %476 = arith.divf %474, %475 : vector<8x6xf32>
    %c0_72 = arith.constant 0 : index
    %c0_73 = arith.constant 0 : index
    %477 = vector.load %arg5[%c0_72, %c0_73] : memref<8x6xf32, #tpu.memory_space<vmem>>, vector<8x6xf32>
    tpu.vector_store %arg5[%c0_72, %c0_73], %476 {strides = array<i32>} : memref<8x6xf32, #tpu.memory_space<vmem>>, vector<8x6xf32>,
    return
  }
}

</mosaic_0001>

<llo_original>
// kernel: feedback_nn_forward.1
$region0: #{feedback_nn_forward.1}
  #allocation0 [shape = 'u32[]', space=smem, size = 0x4, offset = 0x4, fixed_abs, tag = 'smem constant byte address 0x4 - core index']
  #allocation1 [shape = 'u32[144,128]{1,0:T(1,128)}', space=vmem, size = 0x12000, scoped, tag = 'internal scratch']
  %s0 = inlined_call_operand.vmem [shape: bf16[64,32], index: 0, kind: input, shape index: {}]
  %s1 = inlined_call_operand.vmem [shape: s32[8,1], index: 1, kind: input, shape index: {}]
  %s2 = inlined_call_operand.vmem [shape: bf16[128,128], index: 2, kind: input, shape index: {}]
  %s3 = inlined_call_operand.vmem [shape: f32[176,32], index: 3, kind: input, shape index: {}]
  %s4 = inlined_call_operand.vmem [shape: f32[8,128], index: 4, kind: input, shape index: {}]
  %s5 = inlined_call_operand.vmem [shape: f32[8,6], index: 5, kind: output, shape index: {}]
  %s6 = sld [smem:[#allocation0]]
  $region30: #{feedback_nn_forward.1} parent=0
    _
  %s8 = ssub.s32 1, %s6
  %s9 = scalar_select 0, %s8, %s6
  // Predicated region
  $region2: #{feedback_nn_forward.1} parent=0 // pred_check
    _
  $region3: #{feedback_nn_forward.1} parent=0 // pred_check_branch
    %11 = sbr.rel (0) target = $region5
  $region4: #{feedback_nn_forward.1} parent=0 // pred_region
    _
  $region5: #{feedback_nn_forward.1} parent=0 // pred_fallthru
    _
  // Predicated region
  $region6: #{feedback_nn_forward.1} parent=0 // pred_check
    _
  $region7: #{feedback_nn_forward.1} parent=0 // pred_check_branch
    %13 = sbr.rel (0) target = $region9
  $region8: #{feedback_nn_forward.1} parent=0 // pred_region
    _
  $region9: #{feedback_nn_forward.1} parent=0 // pred_fallthru
    _
  // Predicated region
  $region10: #{feedback_nn_forward.1} parent=0 // pred_check
    _
  $region11: #{feedback_nn_forward.1} parent=0 // pred_check_branch
    %15 = sbr.rel (0) target = $region13
  $region12: #{feedback_nn_forward.1} parent=0 // pred_region
    _
  $region13: #{feedback_nn_forward.1} parent=0 // pred_fallthru
    _
  // Predicated region
  $region14: #{feedback_nn_forward.1} parent=0 // pred_check
    _
  $region15: #{feedback_nn_forward.1} parent=0 // pred_check_branch
    %17 = sbr.rel (0) target = $region17
  $region16: #{feedback_nn_forward.1} parent=0 // pred_region
    _
  $region17: #{feedback_nn_forward.1} parent=0 // pred_fallthru
    _
  // Predicated region
  $region18: #{feedback_nn_forward.1} parent=0 // pred_check
    _
  $region19: #{feedback_nn_forward.1} parent=0 // pred_check_branch
    %19 = sbr.rel (0) target = $region21
  $region20: #{feedback_nn_forward.1} parent=0 // pred_region
    _
  $region21: #{feedback_nn_forward.1} parent=0 // pred_fallthru
    _
  %v21 = vld [vmem:[%s1] sm:$0xff]
  %v22 = vld [vmem:[%s2] sm:$0xf]
  %v23 = vld [vmem:[%s2 + $0x4] sm:$0xf]
  %v24 = vld [vmem:[%s2 + $0x8] sm:$0xf]
  %v25 = vld [vmem:[%s2 + $0xc] sm:$0xf]
  %v26 = vld [vmem:[%s2 + $0x10] sm:$0xf]
  %v27 = vld [vmem:[%s2 + $0x14] sm:$0xf]
  %v28 = vld [vmem:[%s2 + $0x18] sm:$0xf]
  %v29 = vld [vmem:[%s2 + $0x1c] sm:$0xf]
  %v30 = vld [vmem:[%s2 + $0x20] sm:$0xf]
  %v31 = vld [vmem:[%s2 + $0x24] sm:$0xf]
  %v32 = vld [vmem:[%s2 + $0x28] sm:$0xf]
  %v33 = vld [vmem:[%s2 + $0x2c] sm:$0xf]
  %v34 = vld [vmem:[%s2 + $0x30] sm:$0xf]
  %v35 = vld [vmem:[%s2 + $0x34] sm:$0xf]
  %v36 = vld [vmem:[%s2 + $0x38] sm:$0xf]
  %v37 = vld [vmem:[%s2 + $0x3c] sm:$0xf]
  %v38 = vld [vmem:[%s3] sm:$0xff]
  %v39 = vld [vmem:[%s3 + $0x8] sm:$0xff]
  %v40 = vld [vmem:[%s3 + $0x10] sm:$0xff]
  %v41 = vld [vmem:[%s3 + $0x18] sm:$0xff]
  %v42 = vld [vmem:[%s3 + $0x20] sm:$0xff]
  %v43 = vld [vmem:[%s3 + $0x28] sm:$0xff]
  %v44 = vld [vmem:[%s3 + $0x30] sm:$0xff]
  %v45 = vld [vmem:[%s3 + $0x38] sm:$0xff]
  %v46 = vld [vmem:[%s3 + $0x40] sm:$0xff]
  %v47 = vld [vmem:[%s3 + $0x48] sm:$0xff]
  %v48 = vld [vmem:[%s3 + $0x50] sm:$0xff]
  %v49 = vld [vmem:[%s3 + $0x58] sm:$0xff]
  %v50 = vld [vmem:[%s3 + $0x60] sm:$0xff]
  %v51 = vld [vmem:[%s3 + $0x68] sm:$0xff]
  %v52 = vld [vmem:[%s3 + $0x70] sm:$0xff]
  %v53 = vld [vmem:[%s3 + $0x78] sm:$0xff]
  %v54 = vld [vmem:[%s3 + $0x80] sm:$0xff]
  %v55 = vld [vmem:[%s3 + $0x88] sm:$0xff]
  %v56 = vld [vmem:[%s3 + $0x90] sm:$0xff]
  %v57 = vld [vmem:[%s3 + $0x98] sm:$0xff]
  %v58 = vld [vmem:[%s3 + $0xa0] sm:$0xff]
  %v59 = vld [vmem:[%s3 + $0xa8] sm:$0xff]
  %v60 = vld [vmem:[%s4] sm:$0x1]
  %v61 = vld [vmem:[%s4 + $0x1] sm:$0x1]
  %v62 = vld [vmem:[%s4 + $0x2] sm:$0x1]
  %v63 = vld [vmem:[%s4 + $0x3] sm:$0x1]
  %v64 = vld [vmem:[%s4 + $0x4] sm:$0x1]
  %v65 = vld [vmem:[%s4 + $0x5] sm:$0x1]
  %v66 = vld [vmem:[%s4 + $0x6] sm:$0x1]
  %v67 = vld [vmem:[%s4 + $0x7] sm:$0x1]
  %v68 = vld [vmem:[%s0] sm:$0xf]
  %v69 = vld [vmem:[%s0 + $0x4] sm:$0xf]
  %v70 = vld [vmem:[%s0 + $0x8] sm:$0xf]
  %v71 = vld [vmem:[%s0 + $0xc] sm:$0xf]
  %v72 = vld [vmem:[%s0 + $0x10] sm:$0xf]
  %v73 = vld [vmem:[%s0 + $0x14] sm:$0xf]
  %v74 = vld [vmem:[%s0 + $0x18] sm:$0xf]
  %v75 = vld [vmem:[%s0 + $0x1c] sm:$0xf]
  %v76 = vlaneseq
  %v77 = vshrl.u32 %v76, 7
  %v78 = vsub.s32 0, %v77
  %v79 = vrot.slane %v60, %v78
  %v88 = vunpack.c.l.b16 %v68
  %v89 = vunpack.c.l.b16 %v69
  %v90 = vunpack.c.l.b16 %v70
  %v91 = vunpack.c.l.b16 %v71
  %v92 = vunpack.c.l.b16 %v72
  %v93 = vunpack.c.l.b16 %v73
  %v94 = vunpack.c.l.b16 %v74
  %v95 = vunpack.c.l.b16 %v75
  %v96 = vpack.c.b16 %v89, %v88
  %v97 = vpack.c.b16 %v91, %v90
  %v98 = vpack.c.b16 %v93, %v92
  %v99 = vpack.c.b16 %v95, %v94
  %v104 = vunpack.c.l.b16 %v22
  %v105 = vunpack.c.l.b16 %v23
  %v106 = vunpack.c.l.b16 %v24
  %v107 = vunpack.c.l.b16 %v25
  %v108 = vpack.c.b16 %v105, %v104
  %v109 = vpack.c.b16 %v107, %v106
  %vm112 = vcmask 261120
  %v114 = vsel %vm112, %v96, 0
  %v117 = vsel %vm112, %v97, 0
  %v120 = vsel %vm112, %v98, 0
  %v123 = vsel %vm112, %v99, 0
  %125 = vmatprep.subr.bf16.mxu0 0
  %126 = vmatpush1.bf16.msra.mxu0 0
  %127 = vmatprep.subr.bf16.mxu0 0
  %128 = vmatpush1.bf16.msra.mxu0 0
  %129 = vmatprep.subr.bf16.mxu0 0
  %130 = vmatpush1.bf16.msra.mxu0 0
  %131 = vmatprep.subr.bf16.mxu0 0
  %132 = vmatpush1.bf16.msra.mxu0 0
  %133 = vmatprep.subr.bf16.mxu0 0
  %134 = vmatpush1.bf16.msra.mxu0 0
  %135 = vmatprep.subr.bf16.mxu0 0
  %136 = vmatpush1.bf16.msra.mxu0 0
  %137 = vmatprep.subr.bf16.mxu0 0
  %138 = vmatpush1.bf16.msra.mxu0 %v109
  %139 = vmatprep.subr.bf16.mxu0 0
  %140 = vmatpush1.bf16.msra.mxu0 %v108
  %141 = vmatprep.subr.bf16.mxu0 0
  %142 = vmatpush2.bf16.msra.mxu0 0
  %143 = vmatprep.subr.bf16.mxu0 0
  %144 = vmatpush2.bf16.msra.mxu0 0
  %145 = vmatprep.subr.bf16.mxu0 0
  %146 = vmatpush2.bf16.msra.mxu0 0
  %147 = vmatprep.subr.bf16.mxu0 0
  %148 = vmatpush2.bf16.msra.mxu0 0
  %149 = vmatprep.subr.bf16.mxu0 0
  %150 = vmatpush2.bf16.msra.mxu0 0
  %151 = vmatprep.subr.bf16.mxu0 0
  %152 = vmatpush2.bf16.msra.mxu0 0
  %153 = vmatprep.subr.bf16.mxu0 0
  %154 = vmatpush2.bf16.msra.mxu0 0
  %155 = vmatprep.subr.bf16.mxu0 0
  %156 = vmatpush2.bf16.msra.mxu0 0
  %157 = vmatprep.mubr.bf16.mxu0 0
  %158 = vmatmul.mubr.bf16.gmra.mxu0 %v114
  %v159 = vpop.f32.mrf.mxu0
  %v160 = vadd.f32 %v79, %v159
  %v161 = vpop.f32.mrf.mxu0
  %v162 = vpop.f32.mrf.mxu0
  %v163 = vadd.f32 %v79, %v162
  %v164 = vpop.f32.mrf.mxu0
  %165 = vmatprep.mubr.bf16.mxu0 0
  %166 = vmatmul.mubr.bf16.gmra.mxu0 %v117
  %v167 = vpop.f32.mrf.mxu0
  %v168 = vadd.f32 %v79, %v167
  %v169 = vpop.f32.mrf.mxu0
  %v170 = vpop.f32.mrf.mxu0
  %v171 = vadd.f32 %v79, %v170
  %v172 = vpop.f32.mrf.mxu0
  %173 = vmatprep.mubr.bf16.mxu0 0
  %174 = vmatmul.mubr.bf16.gmra.mxu0 %v120
  %v175 = vpop.f32.mrf.mxu0
  %v176 = vadd.f32 %v79, %v175
  %v177 = vpop.f32.mrf.mxu0
  %v178 = vpop.f32.mrf.mxu0
  %v179 = vadd.f32 %v79, %v178
  %v180 = vpop.f32.mrf.mxu0
  %181 = vmatprep.mubr.bf16.mxu0 0
  %182 = vmatmul.mubr.bf16.gmra.mxu0 %v123
  %v183 = vpop.f32.mrf.mxu0
  %v184 = vadd.f32 %v79, %v183
  %v185 = vpop.f32.mrf.mxu0
  %v186 = vpop.f32.mrf.mxu0
  %v187 = vadd.f32 %v79, %v186
  %v188 = vpop.f32.mrf.mxu0
  %189 = vdwg.mxu0
  %v194 = vunpack.c.l.b16 %v26
  %v195 = vunpack.c.l.b16 %v27
  %v196 = vunpack.c.l.b16 %v28
  %v197 = vunpack.c.l.b16 %v29
  %v198 = vpack.c.b16 %v195, %v194
  %v199 = vpack.c.b16 %v197, %v196
  %v203 = vsel %vm112, 0, 0
  %205 = vmatprep.subr.bf16.mxu0 0
  %206 = vmatpush1.bf16.msra.mxu0 0
  %207 = vmatprep.subr.bf16.mxu0 0
  %208 = vmatpush1.bf16.msra.mxu0 0
  %209 = vmatprep.subr.bf16.mxu0 0
  %210 = vmatpush1.bf16.msra.mxu0 0
  %211 = vmatprep.subr.bf16.mxu0 0
  %212 = vmatpush1.bf16.msra.mxu0 0
  %213 = vmatprep.subr.bf16.mxu0 0
  %214 = vmatpush1.bf16.msra.mxu0 0
  %215 = vmatprep.subr.bf16.mxu0 0
  %216 = vmatpush1.bf16.msra.mxu0 0
  %217 = vmatprep.subr.bf16.mxu0 0
  %218 = vmatpush1.bf16.msra.mxu0 %v199
  %219 = vmatprep.subr.bf16.mxu0 0
  %220 = vmatpush1.bf16.msra.mxu0 %v198
  %221 = vmatprep.subr.bf16.mxu0 0
  %222 = vmatpush2.bf16.msra.mxu0 0
  %223 = vmatprep.subr.bf16.mxu0 0
  %224 = vmatpush2.bf16.msra.mxu0 0
  %225 = vmatprep.subr.bf16.mxu0 0
  %226 = vmatpush2.bf16.msra.mxu0 0
  %227 = vmatprep.subr.bf16.mxu0 0
  %228 = vmatpush2.bf16.msra.mxu0 0
  %229 = vmatprep.subr.bf16.mxu0 0
  %230 = vmatpush2.bf16.msra.mxu0 0
  %231 = vmatprep.subr.bf16.mxu0 0
  %232 = vmatpush2.bf16.msra.mxu0 0
  %233 = vmatprep.subr.bf16.mxu0 0
  %234 = vmatpush2.bf16.msra.mxu0 0
  %235 = vmatprep.subr.bf16.mxu0 0
  %236 = vmatpush2.bf16.msra.mxu0 0
  %237 = vmatprep.mubr.bf16.mxu0 0
  %238 = vmatmul.mubr.bf16.gmra.mxu0 %v203
  %v239 = vpop.f32.mrf.mxu0
  %v240 = vadd.f32 0.0, %v239
  %v241 = vpop.f32.mrf.mxu0
  %v242 = vpop.f32.mrf.mxu0
  %v243 = vpop.f32.mrf.mxu0
  %244 = vdwg.mxu0
  %v245 = vadd.f32 %v160, %v240
  %v246 = vxor.u32 %v245, 2147483648
  %v247 = vmul.f32 %v246, 1.442695
  %v248 = vpow.pop %v247
  %v249 = vadd.f32 %v248, 1.0
  %v250 = vrcp.pop %v249
  %v251 = vmul.f32 1.0, %v250
  %v252 = vlaneseq
  %v253 = vshrl.u32 %v252, 7
  %v254 = vsub.s32 0, %v253
  %v255 = vrot.slane %v62, %v254
  %257 = vrot.lane.b32.xlu0 %v255, 64
  %v258 = vpop.permute.xlu0 %257
  %v260 = vadd.f32 %v240, %v258
  %262 = vrot.lane.b32.xlu0 %v260, 64
  %v263 = vpop.permute.xlu0 %262
  %v265 = vmul.f32 %v251, %v263
  %267 = vrot.lane.b32.xlu0 %v265, 64
  %v268 = vpop.permute.xlu0 %267
  %v270 = vadd.f32 %v160, %v268
  %v271 = vtanh.pop %v270
  %v272 = vsub.f32 0.0, %v271
  %274 = vrot.lane.b32.xlu0 %v272, 96
  %v275 = vpop.permute.xlu0 %274
  %v277 = vmul.f32 %v251, %v275
  %279 = vrot.lane.b32.xlu0 %v277, 32
  %v280 = vpop.permute.xlu0 %279
  %v282 = vadd.f32 %v271, %v280
  %284 = vrot.lane.b32.xlu0 %v282, 64
  %v285 = vpop.permute.xlu0 %284
  %v287 = vsel %vm112, %v285, 0.0
  %v288 = vpack.c.bf16 %v287, %v287
  %v289 = vlaneseq
  %v290 = vshrl.u32 %v289, 7
  %v291 = vsub.s32 0, %v290
  %v292 = vrot.slane %v61, %v291
  %v301 = vunpack.c.l.b16 %v30
  %v302 = vunpack.c.l.b16 %v31
  %v303 = vunpack.c.l.b16 %v32
  %v304 = vunpack.c.l.b16 %v33
  %v305 = vunpack.c.l.b16 %v34
  %v306 = vunpack.c.l.b16 %v35
  %v307 = vunpack.c.l.b16 %v36
  %v308 = vunpack.c.l.b16 %v37
  %v309 = vpack.c.b16 %v302, %v301
  %v310 = vpack.c.b16 %v304, %v303
  %v311 = vpack.c.b16 %v306, %v305
  %v312 = vpack.c.b16 %v308, %v307
  %vm317 = vcmask 523264
  %v319 = vsel %vm317, %v288, 0
  %321 = vmatprep.subr.bf16.mxu0 0
  %322 = vmatpush1.bf16.msra.mxu0 0
  %323 = vmatprep.subr.bf16.mxu0 0
  %324 = vmatpush1.bf16.msra.mxu0 0
  %325 = vmatprep.subr.bf16.mxu0 0
  %326 = vmatpush1.bf16.msra.mxu0 0
  %327 = vmatprep.subr.bf16.mxu0 0
  %328 = vmatpush1.bf16.msra.mxu0 0
  %329 = vmatprep.subr.bf16.mxu0 0
  %330 = vmatpush1.bf16.msra.mxu0 %v312
  %331 = vmatprep.subr.bf16.mxu0 0
  %332 = vmatpush1.bf16.msra.mxu0 %v311
  %333 = vmatprep.subr.bf16.mxu0 0
  %334 = vmatpush1.bf16.msra.mxu0 %v310
  %335 = vmatprep.subr.bf16.mxu0 0
  %336 = vmatpush1.bf16.msra.mxu0 %v309
  %337 = vmatprep.subr.bf16.mxu0 0
  %338 = vmatpush2.bf16.msra.mxu0 0
  %339 = vmatprep.subr.bf16.mxu0 0
  %340 = vmatpush2.bf16.msra.mxu0 0
  %341 = vmatprep.subr.bf16.mxu0 0
  %342 = vmatpush2.bf16.msra.mxu0 0
  %343 = vmatprep.subr.bf16.mxu0 0
  %344 = vmatpush2.bf16.msra.mxu0 0
  %345 = vmatprep.subr.bf16.mxu0 0
  %346 = vmatpush2.bf16.msra.mxu0 0
  %347 = vmatprep.subr.bf16.mxu0 0
  %348 = vmatpush2.bf16.msra.mxu0 0
  %349 = vmatprep.subr.bf16.mxu0 0
  %350 = vmatpush2.bf16.msra.mxu0 0
  %351 = vmatprep.subr.bf16.mxu0 0
  %352 = vmatpush2.bf16.msra.mxu0 0
  %353 = vmatprep.mubr.bf16.mxu0 0
  %354 = vmatmul.mubr.bf16.gmra.mxu0 %v319
  %v355 = vpop.f32.mrf.mxu0
  %v356 = vadd.f32 %v292, %v355
  %v357 = vpop.f32.mrf.mxu0
  %v358 = vpop.f32.mrf.mxu0
  %v359 = vpop.f32.mrf.mxu0
  %360 = vdwg.mxu0
  %v361 = vxor.u32 %v356, 2147483648
  %v362 = vmul.f32 %v361, 1.442695
  %v363 = vpow.pop %v362
  %v364 = vadd.f32 %v363, 1.0
  %v365 = vrcp.pop %v364
  %v366 = vmul.f32 1.0, %v365
  %368 = vrot.lane.b32.xlu0 %v356, 32
  %v369 = vpop.permute.xlu0 %368
  %v371 = vmul.f32 %v366, %v369
  %373 = vrot.lane.b32.xlu0 %v371, 64
  %v374 = vpop.permute.xlu0 %373
  %v376 = vadd.f32 %v356, %v374
  %v377 = vtanh.pop %v376
  %v378 = vsub.f32 0.0, %v377
  %380 = vrot.lane.b32.xlu0 %v378, 96
  %v381 = vpop.permute.xlu0 %380
  %v383 = vmul.f32 %v366, %v381
  %385 = vrot.lane.b32.xlu0 %v383, 32
  %v386 = vpop.permute.xlu0 %385
  %v388 = vadd.f32 %v377, %v386
  %vm389 = vcmp.gt.s32.totalorder %v21, 0
  %v390 = vsel %vm389, 1, 0
  %391 = vset.pattern.permute.xlu0 0
  %392 = vperm.xlu0 %391, %v390
  %v393 = vpop.permute.xlu0 %392
  %vm394 = vcmp.eq.s32.totalorder %v393, 1
  %v395 = vsel %vm394, %v282, 0.0
  %v396 = vsel %vm394, %v388, 0.0
  %v397 = vpack.c.bf16 %v395, %v395
  %399 = vrot.lane.b32.xlu0 %v397, 64
  %v400 = vpop.permute.xlu0 %399
  %v402 = vsel %vm112, %v400, 0
  %404 = vmatprep.subr.bf16.mxu0 0
  %405 = vmatpush1.bf16.msra.mxu0 0
  %406 = vmatprep.subr.bf16.mxu0 0
  %407 = vmatpush1.bf16.msra.mxu0 0
  %408 = vmatprep.subr.bf16.mxu0 0
  %409 = vmatpush1.bf16.msra.mxu0 0
  %410 = vmatprep.subr.bf16.mxu0 0
  %411 = vmatpush1.bf16.msra.mxu0 0
  %412 = vmatprep.subr.bf16.mxu0 0
  %413 = vmatpush1.bf16.msra.mxu0 0
  %414 = vmatprep.subr.bf16.mxu0 0
  %415 = vmatpush1.bf16.msra.mxu0 0
  %416 = vmatprep.subr.bf16.mxu0 0
  %417 = vmatpush1.bf16.msra.mxu0 %v199
  %418 = vmatprep.subr.bf16.mxu0 0
  %419 = vmatpush1.bf16.msra.mxu0 %v198
  %420 = vmatprep.subr.bf16.mxu0 0
  %421 = vmatpush2.bf16.msra.mxu0 0
  %422 = vmatprep.subr.bf16.mxu0 0
  %423 = vmatpush2.bf16.msra.mxu0 0
  %424 = vmatprep.subr.bf16.mxu0 0
  %425 = vmatpush2.bf16.msra.mxu0 0
  %426 = vmatprep.subr.bf16.mxu0 0
  %427 = vmatpush2.bf16.msra.mxu0 0
  %428 = vmatprep.subr.bf16.mxu0 0
  %429 = vmatpush2.bf16.msra.mxu0 0
  %430 = vmatprep.subr.bf16.mxu0 0
  %431 = vmatpush2.bf16.msra.mxu0 0
  %432 = vmatprep.subr.bf16.mxu0 0
  %433 = vmatpush2.bf16.msra.mxu0 0
  %434 = vmatprep.subr.bf16.mxu0 0
  %435 = vmatpush2.bf16.msra.mxu0 0
  %436 = vmatprep.mubr.bf16.mxu0 0
  %437 = vmatmul.mubr.bf16.gmra.mxu0 %v402
  %v438 = vpop.f32.mrf.mxu0
  %v439 = vadd.f32 0.0, %v438
  %v440 = vpop.f32.mrf.mxu0
  %v441 = vpop.f32.mrf.mxu0
  %v442 = vpop.f32.mrf.mxu0
  %443 = vdwg.mxu0
  %v444 = vadd.f32 %v163, %v439
  %v445 = vxor.u32 %v444, 2147483648
  %v446 = vmul.f32 %v445, 1.442695
  %v447 = vpow.pop %v446
  %v448 = vadd.f32 %v447, 1.0
  %v449 = vrcp.pop %v448
  %v450 = vmul.f32 1.0, %v449
  %v451 = vadd.f32 %v439, %v258
  %453 = vrot.lane.b32.xlu0 %v451, 64
  %v454 = vpop.permute.xlu0 %453
  %v456 = vmul.f32 %v450, %v454
  %458 = vrot.lane.b32.xlu0 %v456, 64
  %v459 = vpop.permute.xlu0 %458
  %v461 = vadd.f32 %v163, %v459
  %v462 = vtanh.pop %v461
  %v463 = vsub.f32 %v395, %v462
  %465 = vrot.lane.b32.xlu0 %v463, 96
  %v466 = vpop.permute.xlu0 %465
  %v468 = vmul.f32 %v450, %v466
  %470 = vrot.lane.b32.xlu0 %v468, 32
  %v471 = vpop.permute.xlu0 %470
  %v473 = vadd.f32 %v462, %v471
  %475 = vrot.lane.b32.xlu0 %v473, 64
  %v476 = vpop.permute.xlu0 %475
  %479 = vrot.lane.b32.xlu0 %v396, 96
  %v480 = vpop.permute.xlu0 %479
  %v482 = vsel %vm112, %v476, %v480
  %v483 = vpack.c.bf16 %v482, %v482
  %v485 = vsel %vm317, %v483, 0
  %487 = vmatprep.subr.bf16.mxu0 0
  %488 = vmatpush1.bf16.msra.mxu0 0
  %489 = vmatprep.subr.bf16.mxu0 0
  %490 = vmatpush1.bf16.msra.mxu0 0
  %491 = vmatprep.subr.bf16.mxu0 0
  %492 = vmatpush1.bf16.msra.mxu0 0
  %493 = vmatprep.subr.bf16.mxu0 0
  %494 = vmatpush1.bf16.msra.mxu0 0
  %495 = vmatprep.subr.bf16.mxu0 0
  %496 = vmatpush1.bf16.msra.mxu0 %v312
  %497 = vmatprep.subr.bf16.mxu0 0
  %498 = vmatpush1.bf16.msra.mxu0 %v311
  %499 = vmatprep.subr.bf16.mxu0 0
  %500 = vmatpush1.bf16.msra.mxu0 %v310
  %501 = vmatprep.subr.bf16.mxu0 0
  %502 = vmatpush1.bf16.msra.mxu0 %v309
  %503 = vmatprep.subr.bf16.mxu0 0
  %504 = vmatpush2.bf16.msra.mxu0 0
  %505 = vmatprep.subr.bf16.mxu0 0
  %506 = vmatpush2.bf16.msra.mxu0 0
  %507 = vmatprep.subr.bf16.mxu0 0
  %508 = vmatpush2.bf16.msra.mxu0 0
  %509 = vmatprep.subr.bf16.mxu0 0
  %510 = vmatpush2.bf16.msra.mxu0 0
  %511 = vmatprep.subr.bf16.mxu0 0
  %512 = vmatpush2.bf16.msra.mxu0 0
  %513 = vmatprep.subr.bf16.mxu0 0
  %514 = vmatpush2.bf16.msra.mxu0 0
  %515 = vmatprep.subr.bf16.mxu0 0
  %516 = vmatpush2.bf16.msra.mxu0 0
  %517 = vmatprep.subr.bf16.mxu0 0
  %518 = vmatpush2.bf16.msra.mxu0 0
  %519 = vmatprep.mubr.bf16.mxu0 0
  %520 = vmatmul.mubr.bf16.gmra.mxu0 %v485
  %v521 = vpop.f32.mrf.mxu0
  %v522 = vadd.f32 %v292, %v521
  %v523 = vpop.f32.mrf.mxu0
  %v524 = vpop.f32.mrf.mxu0
  %v525 = vpop.f32.mrf.mxu0
  %526 = vdwg.mxu0
  %v527 = vxor.u32 %v522, 2147483648
  %v528 = vmul.f32 %v527, 1.442695
  %v529 = vpow.pop %v528
  %v530 = vadd.f32 %v529, 1.0
  %v531 = vrcp.pop %v530
  %v532 = vmul.f32 1.0, %v531
  %534 = vrot.lane.b32.xlu0 %v522, 32
  %v535 = vpop.permute.xlu0 %534
  %v537 = vmul.f32 %v532, %v535
  %539 = vrot.lane.b32.xlu0 %v537, 64
  %v540 = vpop.permute.xlu0 %539
  %v542 = vadd.f32 %v522, %v540
  %v543 = vtanh.pop %v542
  %v544 = vsub.f32 %v396, %v543
  %546 = vrot.lane.b32.xlu0 %v544, 96
  %v547 = vpop.permute.xlu0 %546
  %v549 = vmul.f32 %v532, %v547
  %551 = vrot.lane.b32.xlu0 %v549, 32
  %v552 = vpop.permute.xlu0 %551
  %v554 = vadd.f32 %v543, %v552
  %vm555 = vcmp.gt.s32.totalorder %v21, 1
  %v556 = vsel %vm555, 1, 0
  %557 = vset.pattern.permute.xlu0 0
  %558 = vperm.xlu0 %557, %v556
  %v559 = vpop.permute.xlu0 %558
  %vm560 = vcmp.eq.s32.totalorder %v559, 1
  %v561 = vsel %vm560, %v473, %v395
  %v562 = vsel %vm560, %v554, %v396
  %v563 = vpack.c.bf16 %v561, %v561
  %565 = vrot.lane.b32.xlu0 %v563, 64
  %v566 = vpop.permute.xlu0 %565
  %v568 = vsel %vm112, %v566, 0
  %570 = vmatprep.subr.bf16.mxu0 0
  %571 = vmatpush1.bf16.msra.mxu0 0
  %572 = vmatprep.subr.bf16.mxu0 0
  %573 = vmatpush1.bf16.msra.mxu0 0
  %574 = vmatprep.subr.bf16.mxu0 0
  %575 = vmatpush1.bf16.msra.mxu0 0
  %576 = vmatprep.subr.bf16.mxu0 0
  %577 = vmatpush1.bf16.msra.mxu0 0
  %578 = vmatprep.subr.bf16.mxu0 0
  %579 = vmatpush1.bf16.msra.mxu0 0
  %580 = vmatprep.subr.bf16.mxu0 0
  %581 = vmatpush1.bf16.msra.mxu0 0
  %582 = vmatprep.subr.bf16.mxu0 0
  %583 = vmatpush1.bf16.msra.mxu0 %v199
  %584 = vmatprep.subr.bf16.mxu0 0
  %585 = vmatpush1.bf16.msra.mxu0 %v198
  %586 = vmatprep.subr.bf16.mxu0 0
  %587 = vmatpush2.bf16.msra.mxu0 0
  %588 = vmatprep.subr.bf16.mxu0 0
  %589 = vmatpush2.bf16.msra.mxu0 0
  %590 = vmatprep.subr.bf16.mxu0 0
  %591 = vmatpush2.bf16.msra.mxu0 0
  %592 = vmatprep.subr.bf16.mxu0 0
  %593 = vmatpush2.bf16.msra.mxu0 0
  %594 = vmatprep.subr.bf16.mxu0 0
  %595 = vmatpush2.bf16.msra.mxu0 0
  %596 = vmatprep.subr.bf16.mxu0 0
  %597 = vmatpush2.bf16.msra.mxu0 0
  %598 = vmatprep.subr.bf16.mxu0 0
  %599 = vmatpush2.bf16.msra.mxu0 0
  %600 = vmatprep.subr.bf16.mxu0 0
  %601 = vmatpush2.bf16.msra.mxu0 0
  %602 = vmatprep.mubr.bf16.mxu0 0
  %603 = vmatmul.mubr.bf16.gmra.mxu0 %v568
  %v604 = vpop.f32.mrf.mxu0
  %v605 = vadd.f32 0.0, %v604
  %v606 = vpop.f32.mrf.mxu0
  %v607 = vpop.f32.mrf.mxu0
  %v608 = vpop.f32.mrf.mxu0
  %609 = vdwg.mxu0
  %v610 = vadd.f32 %v168, %v605
  %v611 = vxor.u32 %v610, 2147483648
  %v612 = vmul.f32 %v611, 1.442695
  %v613 = vpow.pop %v612
  %v614 = vadd.f32 %v613, 1.0
  %v615 = vrcp.pop %v614
  %v616 = vmul.f32 1.0, %v615
  %v617 = vadd.f32 %v605, %v258
  %619 = vrot.lane.b32.xlu0 %v617, 64
  %v620 = vpop.permute.xlu0 %619
  %v622 = vmul.f32 %v616, %v620
  %624 = vrot.lane.b32.xlu0 %v622, 64
  %v625 = vpop.permute.xlu0 %624
  %v627 = vadd.f32 %v168, %v625
  %v628 = vtanh.pop %v627
  %v629 = vsub.f32 %v561, %v628
  %631 = vrot.lane.b32.xlu0 %v629, 96
  %v632 = vpop.permute.xlu0 %631
  %v634 = vmul.f32 %v616, %v632
  %636 = vrot.lane.b32.xlu0 %v634, 32
  %v637 = vpop.permute.xlu0 %636
  %v639 = vadd.f32 %v628, %v637
  %641 = vrot.lane.b32.xlu0 %v639, 64
  %v642 = vpop.permute.xlu0 %641
  %645 = vrot.lane.b32.xlu0 %v562, 96
  %v646 = vpop.permute.xlu0 %645
  %v648 = vsel %vm112, %v642, %v646
  %v649 = vpack.c.bf16 %v648, %v648
  %v651 = vsel %vm317, %v649, 0
  %653 = vmatprep.subr.bf16.mxu0 0
  %654 = vmatpush1.bf16.msra.mxu0 0
  %655 = vmatprep.subr.bf16.mxu0 0
  %656 = vmatpush1.bf16.msra.mxu0 0
  %657 = vmatprep.subr.bf16.mxu0 0
  %658 = vmatpush1.bf16.msra.mxu0 0
  %659 = vmatprep.subr.bf16.mxu0 0
  %660 = vmatpush1.bf16.msra.mxu0 0
  %661 = vmatprep.subr.bf16.mxu0 0
  %662 = vmatpush1.bf16.msra.mxu0 %v312
  %663 = vmatprep.subr.bf16.mxu0 0
  %664 = vmatpush1.bf16.msra.mxu0 %v311
  %665 = vmatprep.subr.bf16.mxu0 0
  %666 = vmatpush1.bf16.msra.mxu0 %v310
  %667 = vmatprep.subr.bf16.mxu0 0
  %668 = vmatpush1.bf16.msra.mxu0 %v309
  %669 = vmatprep.subr.bf16.mxu0 0
  %670 = vmatpush2.bf16.msra.mxu0 0
  %671 = vmatprep.subr.bf16.mxu0 0
  %672 = vmatpush2.bf16.msra.mxu0 0
  %673 = vmatprep.subr.bf16.mxu0 0
  %674 = vmatpush2.bf16.msra.mxu0 0
  %675 = vmatprep.subr.bf16.mxu0 0
  %676 = vmatpush2.bf16.msra.mxu0 0
  %677 = vmatprep.subr.bf16.mxu0 0
  %678 = vmatpush2.bf16.msra.mxu0 0
  %679 = vmatprep.subr.bf16.mxu0 0
  %680 = vmatpush2.bf16.msra.mxu0 0
  %681 = vmatprep.subr.bf16.mxu0 0
  %682 = vmatpush2.bf16.msra.mxu0 0
  %683 = vmatprep.subr.bf16.mxu0 0
  %684 = vmatpush2.bf16.msra.mxu0 0
  %685 = vmatprep.mubr.bf16.mxu0 0
  %686 = vmatmul.mubr.bf16.gmra.mxu0 %v651
  %v687 = vpop.f32.mrf.mxu0
  %v688 = vadd.f32 %v292, %v687
  %v689 = vpop.f32.mrf.mxu0
  %v690 = vpop.f32.mrf.mxu0
  %v691 = vpop.f32.mrf.mxu0
  %692 = vdwg.mxu0
  %v693 = vxor.u32 %v688, 2147483648
  %v694 = vmul.f32 %v693, 1.442695
  %v695 = vpow.pop %v694
  %v696 = vadd.f32 %v695, 1.0
  %v697 = vrcp.pop %v696
  %v698 = vmul.f32 1.0, %v697
  %700 = vrot.lane.b32.xlu0 %v688, 32
  %v701 = vpop.permute.xlu0 %700
  %v703 = vmul.f32 %v698, %v701
  %705 = vrot.lane.b32.xlu0 %v703, 64
  %v706 = vpop.permute.xlu0 %705
  %v708 = vadd.f32 %v688, %v706
  %v709 = vtanh.pop %v708
  %v710 = vsub.f32 %v562, %v709
  %712 = vrot.lane.b32.xlu0 %v710, 96
  %v713 = vpop.permute.xlu0 %712
  %v715 = vmul.f32 %v698, %v713
  %717 = vrot.lane.b32.xlu0 %v715, 32
  %v718 = vpop.permute.xlu0 %717
  %v720 = vadd.f32 %v709, %v718
  %vm721 = vcmp.gt.s32.totalorder %v21, 2
  %v722 = vsel %vm721, 1, 0
  %723 = vset.pattern.permute.xlu0 0
  %724 = vperm.xlu0 %723, %v722
  %v725 = vpop.permute.xlu0 %724
  %vm726 = vcmp.eq.s32.totalorder %v725, 1
  %v727 = vsel %vm726, %v639, %v561
  %v728 = vsel %vm726, %v720, %v562
  %v729 = vpack.c.bf16 %v727, %v727
  %731 = vrot.lane.b32.xlu0 %v729, 64
  %v732 = vpop.permute.xlu0 %731
  %v734 = vsel %vm112, %v732, 0
  %736 = vmatprep.subr.bf16.mxu0 0
  %737 = vmatpush1.bf16.msra.mxu0 0
  %738 = vmatprep.subr.bf16.mxu0 0
  %739 = vmatpush1.bf16.msra.mxu0 0
  %740 = vmatprep.subr.bf16.mxu0 0
  %741 = vmatpush1.bf16.msra.mxu0 0
  %742 = vmatprep.subr.bf16.mxu0 0
  %743 = vmatpush1.bf16.msra.mxu0 0
  %744 = vmatprep.subr.bf16.mxu0 0
  %745 = vmatpush1.bf16.msra.mxu0 0
  %746 = vmatprep.subr.bf16.mxu0 0
  %747 = vmatpush1.bf16.msra.mxu0 0
  %748 = vmatprep.subr.bf16.mxu0 0
  %749 = vmatpush1.bf16.msra.mxu0 %v199
  %750 = vmatprep.subr.bf16.mxu0 0
  %751 = vmatpush1.bf16.msra.mxu0 %v198
  %752 = vmatprep.subr.bf16.mxu0 0
  %753 = vmatpush2.bf16.msra.mxu0 0
  %754 = vmatprep.subr.bf16.mxu0 0
  %755 = vmatpush2.bf16.msra.mxu0 0
  %756 = vmatprep.subr.bf16.mxu0 0
  %757 = vmatpush2.bf16.msra.mxu0 0
  %758 = vmatprep.subr.bf16.mxu0 0
  %759 = vmatpush2.bf16.msra.mxu0 0
  %760 = vmatprep.subr.bf16.mxu0 0
  %761 = vmatpush2.bf16.msra.mxu0 0
  %762 = vmatprep.subr.bf16.mxu0 0
  %763 = vmatpush2.bf16.msra.mxu0 0
  %764 = vmatprep.subr.bf16.mxu0 0
  %765 = vmatpush2.bf16.msra.mxu0 0
  %766 = vmatprep.subr.bf16.mxu0 0
  %767 = vmatpush2.bf16.msra.mxu0 0
  %768 = vmatprep.mubr.bf16.mxu0 0
  %769 = vmatmul.mubr.bf16.gmra.mxu0 %v734
  %v770 = vpop.f32.mrf.mxu0
  %v771 = vadd.f32 0.0, %v770
  %v772 = vpop.f32.mrf.mxu0
  %v773 = vpop.f32.mrf.mxu0
  %v774 = vpop.f32.mrf.mxu0
  %775 = vdwg.mxu0
  %v776 = vadd.f32 %v171, %v771
  %v777 = vxor.u32 %v776, 2147483648
  %v778 = vmul.f32 %v777, 1.442695
  %v779 = vpow.pop %v778
  %v780 = vadd.f32 %v779, 1.0
  %v781 = vrcp.pop %v780
  %v782 = vmul.f32 1.0, %v781
  %v783 = vadd.f32 %v771, %v258
  %785 = vrot.lane.b32.xlu0 %v783, 64
  %v786 = vpop.permute.xlu0 %785
  %v788 = vmul.f32 %v782, %v786
  %790 = vrot.lane.b32.xlu0 %v788, 64
  %v791 = vpop.permute.xlu0 %790
  %v793 = vadd.f32 %v171, %v791
  %v794 = vtanh.pop %v793
  %v795 = vsub.f32 %v727, %v794
  %797 = vrot.lane.b32.xlu0 %v795, 96
  %v798 = vpop.permute.xlu0 %797
  %v800 = vmul.f32 %v782, %v798
  %802 = vrot.lane.b32.xlu0 %v800, 32
  %v803 = vpop.permute.xlu0 %802
  %v805 = vadd.f32 %v794, %v803
  %807 = vrot.lane.b32.xlu0 %v805, 64
  %v808 = vpop.permute.xlu0 %807
  %811 = vrot.lane.b32.xlu0 %v728, 96
  %v812 = vpop.permute.xlu0 %811
  %v814 = vsel %vm112, %v808, %v812
  %v815 = vpack.c.bf16 %v814, %v814
  %v817 = vsel %vm317, %v815, 0
  %819 = vmatprep.subr.bf16.mxu0 0
  %820 = vmatpush1.bf16.msra.mxu0 0
  %821 = vmatprep.subr.bf16.mxu0 0
  %822 = vmatpush1.bf16.msra.mxu0 0
  %823 = vmatprep.subr.bf16.mxu0 0
  %824 = vmatpush1.bf16.msra.mxu0 0
  %825 = vmatprep.subr.bf16.mxu0 0
  %826 = vmatpush1.bf16.msra.mxu0 0
  %827 = vmatprep.subr.bf16.mxu0 0
  %828 = vmatpush1.bf16.msra.mxu0 %v312
  %829 = vmatprep.subr.bf16.mxu0 0
  %830 = vmatpush1.bf16.msra.mxu0 %v311
  %831 = vmatprep.subr.bf16.mxu0 0
  %832 = vmatpush1.bf16.msra.mxu0 %v310
  %833 = vmatprep.subr.bf16.mxu0 0
  %834 = vmatpush1.bf16.msra.mxu0 %v309
  %835 = vmatprep.subr.bf16.mxu0 0
  %836 = vmatpush2.bf16.msra.mxu0 0
  %837 = vmatprep.subr.bf16.mxu0 0
  %838 = vmatpush2.bf16.msra.mxu0 0
  %839 = vmatprep.subr.bf16.mxu0 0
  %840 = vmatpush2.bf16.msra.mxu0 0
  %841 = vmatprep.subr.bf16.mxu0 0
  %842 = vmatpush2.bf16.msra.mxu0 0
  %843 = vmatprep.subr.bf16.mxu0 0
  %844 = vmatpush2.bf16.msra.mxu0 0
  %845 = vmatprep.subr.bf16.mxu0 0
  %846 = vmatpush2.bf16.msra.mxu0 0
  %847 = vmatprep.subr.bf16.mxu0 0
  %848 = vmatpush2.bf16.msra.mxu0 0
  %849 = vmatprep.subr.bf16.mxu0 0
  %850 = vmatpush2.bf16.msra.mxu0 0
  %851 = vmatprep.mubr.bf16.mxu0 0
  %852 = vmatmul.mubr.bf16.gmra.mxu0 %v817
  %v853 = vpop.f32.mrf.mxu0
  %v854 = vadd.f32 %v292, %v853
  %v855 = vpop.f32.mrf.mxu0
  %v856 = vpop.f32.mrf.mxu0
  %v857 = vpop.f32.mrf.mxu0
  %858 = vdwg.mxu0
  %v859 = vxor.u32 %v854, 2147483648
  %v860 = vmul.f32 %v859, 1.442695
  %v861 = vpow.pop %v860
  %v862 = vadd.f32 %v861, 1.0
  %v863 = vrcp.pop %v862
  %v864 = vmul.f32 1.0, %v863
  %866 = vrot.lane.b32.xlu0 %v854, 32
  %v867 = vpop.permute.xlu0 %866
  %v869 = vmul.f32 %v864, %v867
  %871 = vrot.lane.b32.xlu0 %v869, 64
  %v872 = vpop.permute.xlu0 %871
  %v874 = vadd.f32 %v854, %v872
  %v875 = vtanh.pop %v874
  %v876 = vsub.f32 %v728, %v875
  %878 = vrot.lane.b32.xlu0 %v876, 96
  %v879 = vpop.permute.xlu0 %878
  %v881 = vmul.f32 %v864, %v879
  %883 = vrot.lane.b32.xlu0 %v881, 32
  %v884 = vpop.permute.xlu0 %883
  %v886 = vadd.f32 %v875, %v884
  %vm887 = vcmp.gt.s32.totalorder %v21, 3
  %v888 = vsel %vm887, 1, 0
  %889 = vset.pattern.permute.xlu0 0
  %890 = vperm.xlu0 %889, %v888
  %v891 = vpop.permute.xlu0 %890
  %vm892 = vcmp.eq.s32.totalorder %v891, 1
  %v893 = vsel %vm892, %v805, %v727
  %v894 = vsel %vm892, %v886, %v728
  %v895 = vpack.c.bf16 %v893, %v893
  %897 = vrot.lane.b32.xlu0 %v895, 64
  %v898 = vpop.permute.xlu0 %897
  %v900 = vsel %vm112, %v898, 0
  %902 = vmatprep.subr.bf16.mxu0 0
  %903 = vmatpush1.bf16.msra.mxu0 0
  %904 = vmatprep.subr.bf16.mxu0 0
  %905 = vmatpush1.bf16.msra.mxu0 0
  %906 = vmatprep.subr.bf16.mxu0 0
  %907 = vmatpush1.bf16.msra.mxu0 0
  %908 = vmatprep.subr.bf16.mxu0 0
  %909 = vmatpush1.bf16.msra.mxu0 0
  %910 = vmatprep.subr.bf16.mxu0 0
  %911 = vmatpush1.bf16.msra.mxu0 0
  %912 = vmatprep.subr.bf16.mxu0 0
  %913 = vmatpush1.bf16.msra.mxu0 0
  %914 = vmatprep.subr.bf16.mxu0 0
  %915 = vmatpush1.bf16.msra.mxu0 %v199
  %916 = vmatprep.subr.bf16.mxu0 0
  %917 = vmatpush1.bf16.msra.mxu0 %v198
  %918 = vmatprep.subr.bf16.mxu0 0
  %919 = vmatpush2.bf16.msra.mxu0 0
  %920 = vmatprep.subr.bf16.mxu0 0
  %921 = vmatpush2.bf16.msra.mxu0 0
  %922 = vmatprep.subr.bf16.mxu0 0
  %923 = vmatpush2.bf16.msra.mxu0 0
  %924 = vmatprep.subr.bf16.mxu0 0
  %925 = vmatpush2.bf16.msra.mxu0 0
  %926 = vmatprep.subr.bf16.mxu0 0
  %927 = vmatpush2.bf16.msra.mxu0 0
  %928 = vmatprep.subr.bf16.mxu0 0
  %929 = vmatpush2.bf16.msra.mxu0 0
  %930 = vmatprep.subr.bf16.mxu0 0
  %931 = vmatpush2.bf16.msra.mxu0 0
  %932 = vmatprep.subr.bf16.mxu0 0
  %933 = vmatpush2.bf16.msra.mxu0 0
  %934 = vmatprep.mubr.bf16.mxu0 0
  %935 = vmatmul.mubr.bf16.gmra.mxu0 %v900
  %v936 = vpop.f32.mrf.mxu0
  %v937 = vadd.f32 0.0, %v936
  %v938 = vpop.f32.mrf.mxu0
  %v939 = vpop.f32.mrf.mxu0
  %v940 = vpop.f32.mrf.mxu0
  %941 = vdwg.mxu0
  %v942 = vadd.f32 %v176, %v937
  %v943 = vxor.u32 %v942, 2147483648
  %v944 = vmul.f32 %v943, 1.442695
  %v945 = vpow.pop %v944
  %v946 = vadd.f32 %v945, 1.0
  %v947 = vrcp.pop %v946
  %v948 = vmul.f32 1.0, %v947
  %v949 = vadd.f32 %v937, %v258
  %951 = vrot.lane.b32.xlu0 %v949, 64
  %v952 = vpop.permute.xlu0 %951
  %v954 = vmul.f32 %v948, %v952
  %956 = vrot.lane.b32.xlu0 %v954, 64
  %v957 = vpop.permute.xlu0 %956
  %v959 = vadd.f32 %v176, %v957
  %v960 = vtanh.pop %v959
  %v961 = vsub.f32 %v893, %v960
  %963 = vrot.lane.b32.xlu0 %v961, 96
  %v964 = vpop.permute.xlu0 %963
  %v966 = vmul.f32 %v948, %v964
  %968 = vrot.lane.b32.xlu0 %v966, 32
  %v969 = vpop.permute.xlu0 %968
  %v971 = vadd.f32 %v960, %v969
  %973 = vrot.lane.b32.xlu0 %v971, 64
  %v974 = vpop.permute.xlu0 %973
  %977 = vrot.lane.b32.xlu0 %v894, 96
  %v978 = vpop.permute.xlu0 %977
  %v980 = vsel %vm112, %v974, %v978
  %v981 = vpack.c.bf16 %v980, %v980
  %v983 = vsel %vm317, %v981, 0
  %985 = vmatprep.subr.bf16.mxu0 0
  %986 = vmatpush1.bf16.msra.mxu0 0
  %987 = vmatprep.subr.bf16.mxu0 0
  %988 = vmatpush1.bf16.msra.mxu0 0
  %989 = vmatprep.subr.bf16.mxu0 0
  %990 = vmatpush1.bf16.msra.mxu0 0
  %991 = vmatprep.subr.bf16.mxu0 0
  %992 = vmatpush1.bf16.msra.mxu0 0
  %993 = vmatprep.subr.bf16.mxu0 0
  %994 = vmatpush1.bf16.msra.mxu0 %v312
  %995 = vmatprep.subr.bf16.mxu0 0
  %996 = vmatpush1.bf16.msra.mxu0 %v311
  %997 = vmatprep.subr.bf16.mxu0 0
  %998 = vmatpush1.bf16.msra.mxu0 %v310
  %999 = vmatprep.subr.bf16.mxu0 0
  %1000 = vmatpush1.bf16.msra.mxu0 %v309
  %1001 = vmatprep.subr.bf16.mxu0 0
  %1002 = vmatpush2.bf16.msra.mxu0 0
  %1003 = vmatprep.subr.bf16.mxu0 0
  %1004 = vmatpush2.bf16.msra.mxu0 0
  %1005 = vmatprep.subr.bf16.mxu0 0
  %1006 = vmatpush2.bf16.msra.mxu0 0
  %1007 = vmatprep.subr.bf16.mxu0 0
  %1008 = vmatpush2.bf16.msra.mxu0 0
  %1009 = vmatprep.subr.bf16.mxu0 0
  %1010 = vmatpush2.bf16.msra.mxu0 0
  %1011 = vmatprep.subr.bf16.mxu0 0
  %1012 = vmatpush2.bf16.msra.mxu0 0
  %1013 = vmatprep.subr.bf16.mxu0 0
  %1014 = vmatpush2.bf16.msra.mxu0 0
  %1015 = vmatprep.subr.bf16.mxu0 0
  %1016 = vmatpush2.bf16.msra.mxu0 0
  %1017 = vmatprep.mubr.bf16.mxu0 0
  %1018 = vmatmul.mubr.bf16.gmra.mxu0 %v983
  %v1019 = vpop.f32.mrf.mxu0
  %v1020 = vadd.f32 %v292, %v1019
  %v1021 = vpop.f32.mrf.mxu0
  %v1022 = vpop.f32.mrf.mxu0
  %v1023 = vpop.f32.mrf.mxu0
  %1024 = vdwg.mxu0
  %v1025 = vxor.u32 %v1020, 2147483648
  %v1026 = vmul.f32 %v1025, 1.442695
  %v1027 = vpow.pop %v1026
  %v1028 = vadd.f32 %v1027, 1.0
  %v1029 = vrcp.pop %v1028
  %v1030 = vmul.f32 1.0, %v1029
  %1032 = vrot.lane.b32.xlu0 %v1020, 32
  %v1033 = vpop.permute.xlu0 %1032
  %v1035 = vmul.f32 %v1030, %v1033
  %1037 = vrot.lane.b32.xlu0 %v1035, 64
  %v1038 = vpop.permute.xlu0 %1037
  %v1040 = vadd.f32 %v1020, %v1038
  %v1041 = vtanh.pop %v1040
  %v1042 = vsub.f32 %v894, %v1041
  %1044 = vrot.lane.b32.xlu0 %v1042, 96
  %v1045 = vpop.permute.xlu0 %1044
  %v1047 = vmul.f32 %v1030, %v1045
  %1049 = vrot.lane.b32.xlu0 %v1047, 32
  %v1050 = vpop.permute.xlu0 %1049
  %v1052 = vadd.f32 %v1041, %v1050
  %vm1053 = vcmp.gt.s32.totalorder %v21, 4
  %v1054 = vsel %vm1053, 1, 0
  %1055 = vset.pattern.permute.xlu0 0
  %1056 = vperm.xlu0 %1055, %v1054
  %v1057 = vpop.permute.xlu0 %1056
  %vm1058 = vcmp.eq.s32.totalorder %v1057, 1
  %v1059 = vsel %vm1058, %v971, %v893
  %v1060 = vsel %vm1058, %v1052, %v894
  %v1061 = vpack.c.bf16 %v1059, %v1059
  %1063 = vrot.lane.b32.xlu0 %v1061, 64
  %v1064 = vpop.permute.xlu0 %1063
  %v1066 = vsel %vm112, %v1064, 0
  %1068 = vmatprep.subr.bf16.mxu0 0
  %1069 = vmatpush1.bf16.msra.mxu0 0
  %1070 = vmatprep.subr.bf16.mxu0 0
  %1071 = vmatpush1.bf16.msra.mxu0 0
  %1072 = vmatprep.subr.bf16.mxu0 0
  %1073 = vmatpush1.bf16.msra.mxu0 0
  %1074 = vmatprep.subr.bf16.mxu0 0
  %1075 = vmatpush1.bf16.msra.mxu0 0
  %1076 = vmatprep.subr.bf16.mxu0 0
  %1077 = vmatpush1.bf16.msra.mxu0 0
  %1078 = vmatprep.subr.bf16.mxu0 0
  %1079 = vmatpush1.bf16.msra.mxu0 0
  %1080 = vmatprep.subr.bf16.mxu0 0
  %1081 = vmatpush1.bf16.msra.mxu0 %v199
  %1082 = vmatprep.subr.bf16.mxu0 0
  %1083 = vmatpush1.bf16.msra.mxu0 %v198
  %1084 = vmatprep.subr.bf16.mxu0 0
  %1085 = vmatpush2.bf16.msra.mxu0 0
  %1086 = vmatprep.subr.bf16.mxu0 0
  %1087 = vmatpush2.bf16.msra.mxu0 0
  %1088 = vmatprep.subr.bf16.mxu0 0
  %1089 = vmatpush2.bf16.msra.mxu0 0
  %1090 = vmatprep.subr.bf16.mxu0 0
  %1091 = vmatpush2.bf16.msra.mxu0 0
  %1092 = vmatprep.subr.bf16.mxu0 0
  %1093 = vmatpush2.bf16.msra.mxu0 0
  %1094 = vmatprep.subr.bf16.mxu0 0
  %1095 = vmatpush2.bf16.msra.mxu0 0
  %1096 = vmatprep.subr.bf16.mxu0 0
  %1097 = vmatpush2.bf16.msra.mxu0 0
  %1098 = vmatprep.subr.bf16.mxu0 0
  %1099 = vmatpush2.bf16.msra.mxu0 0
  %1100 = vmatprep.mubr.bf16.mxu0 0
  %1101 = vmatmul.mubr.bf16.gmra.mxu0 %v1066
  %v1102 = vpop.f32.mrf.mxu0
  %v1103 = vadd.f32 0.0, %v1102
  %v1104 = vpop.f32.mrf.mxu0
  %v1105 = vpop.f32.mrf.mxu0
  %v1106 = vpop.f32.mrf.mxu0
  %1107 = vdwg.mxu0
  %v1108 = vadd.f32 %v179, %v1103
  %v1109 = vxor.u32 %v1108, 2147483648
  %v1110 = vmul.f32 %v1109, 1.442695
  %v1111 = vpow.pop %v1110
  %v1112 = vadd.f32 %v1111, 1.0
  %v1113 = vrcp.pop %v1112
  %v1114 = vmul.f32 1.0, %v1113
  %v1115 = vadd.f32 %v1103, %v258
  %1117 = vrot.lane.b32.xlu0 %v1115, 64
  %v1118 = vpop.permute.xlu0 %1117
  %v1120 = vmul.f32 %v1114, %v1118
  %1122 = vrot.lane.b32.xlu0 %v1120, 64
  %v1123 = vpop.permute.xlu0 %1122
  %v1125 = vadd.f32 %v179, %v1123
  %v1126 = vtanh.pop %v1125
  %v1127 = vsub.f32 %v1059, %v1126
  %1129 = vrot.lane.b32.xlu0 %v1127, 96
  %v1130 = vpop.permute.xlu0 %1129
  %v1132 = vmul.f32 %v1114, %v1130
  %1134 = vrot.lane.b32.xlu0 %v1132, 32
  %v1135 = vpop.permute.xlu0 %1134
  %v1137 = vadd.f32 %v1126, %v1135
  %1139 = vrot.lane.b32.xlu0 %v1137, 64
  %v1140 = vpop.permute.xlu0 %1139
  %1143 = vrot.lane.b32.xlu0 %v1060, 96
  %v1144 = vpop.permute.xlu0 %1143
  %v1146 = vsel %vm112, %v1140, %v1144
  %v1147 = vpack.c.bf16 %v1146, %v1146
  %v1149 = vsel %vm317, %v1147, 0
  %1151 = vmatprep.subr.bf16.mxu0 0
  %1152 = vmatpush1.bf16.msra.mxu0 0
  %1153 = vmatprep.subr.bf16.mxu0 0
  %1154 = vmatpush1.bf16.msra.mxu0 0
  %1155 = vmatprep.subr.bf16.mxu0 0
  %1156 = vmatpush1.bf16.msra.mxu0 0
  %1157 = vmatprep.subr.bf16.mxu0 0
  %1158 = vmatpush1.bf16.msra.mxu0 0
  %1159 = vmatprep.subr.bf16.mxu0 0
  %1160 = vmatpush1.bf16.msra.mxu0 %v312
  %1161 = vmatprep.subr.bf16.mxu0 0
  %1162 = vmatpush1.bf16.msra.mxu0 %v311
  %1163 = vmatprep.subr.bf16.mxu0 0
  %1164 = vmatpush1.bf16.msra.mxu0 %v310
  %1165 = vmatprep.subr.bf16.mxu0 0
  %1166 = vmatpush1.bf16.msra.mxu0 %v309
  %1167 = vmatprep.subr.bf16.mxu0 0
  %1168 = vmatpush2.bf16.msra.mxu0 0
  %1169 = vmatprep.subr.bf16.mxu0 0
  %1170 = vmatpush2.bf16.msra.mxu0 0
  %1171 = vmatprep.subr.bf16.mxu0 0
  %1172 = vmatpush2.bf16.msra.mxu0 0
  %1173 = vmatprep.subr.bf16.mxu0 0
  %1174 = vmatpush2.bf16.msra.mxu0 0
  %1175 = vmatprep.subr.bf16.mxu0 0
  %1176 = vmatpush2.bf16.msra.mxu0 0
  %1177 = vmatprep.subr.bf16.mxu0 0
  %1178 = vmatpush2.bf16.msra.mxu0 0
  %1179 = vmatprep.subr.bf16.mxu0 0
  %1180 = vmatpush2.bf16.msra.mxu0 0
  %1181 = vmatprep.subr.bf16.mxu0 0
  %1182 = vmatpush2.bf16.msra.mxu0 0
  %1183 = vmatprep.mubr.bf16.mxu0 0
  %1184 = vmatmul.mubr.bf16.gmra.mxu0 %v1149
  %v1185 = vpop.f32.mrf.mxu0
  %v1186 = vadd.f32 %v292, %v1185
  %v1187 = vpop.f32.mrf.mxu0
  %v1188 = vpop.f32.mrf.mxu0
  %v1189 = vpop.f32.mrf.mxu0
  %1190 = vdwg.mxu0
  %v1191 = vxor.u32 %v1186, 2147483648
  %v1192 = vmul.f32 %v1191, 1.442695
  %v1193 = vpow.pop %v1192
  %v1194 = vadd.f32 %v1193, 1.0
  %v1195 = vrcp.pop %v1194
  %v1196 = vmul.f32 1.0, %v1195
  %1198 = vrot.lane.b32.xlu0 %v1186, 32
  %v1199 = vpop.permute.xlu0 %1198
  %v1201 = vmul.f32 %v1196, %v1199
  %1203 = vrot.lane.b32.xlu0 %v1201, 64
  %v1204 = vpop.permute.xlu0 %1203
  %v1206 = vadd.f32 %v1186, %v1204
  %v1207 = vtanh.pop %v1206
  %v1208 = vsub.f32 %v1060, %v1207
  %1210 = vrot.lane.b32.xlu0 %v1208, 96
  %v1211 = vpop.permute.xlu0 %1210
  %v1213 = vmul.f32 %v1196, %v1211
  %1215 = vrot.lane.b32.xlu0 %v1213, 32
  %v1216 = vpop.permute.xlu0 %1215
  %v1218 = vadd.f32 %v1207, %v1216
  %vm1219 = vcmp.gt.s32.totalorder %v21, 5
  %v1220 = vsel %vm1219, 1, 0
  %1221 = vset.pattern.permute.xlu0 0
  %1222 = vperm.xlu0 %1221, %v1220
  %v1223 = vpop.permute.xlu0 %1222
  %vm1224 = vcmp.eq.s32.totalorder %v1223, 1
  %v1225 = vsel %vm1224, %v1137, %v1059
  %v1226 = vsel %vm1224, %v1218, %v1060
  %v1227 = vpack.c.bf16 %v1225, %v1225
  %1229 = vrot.lane.b32.xlu0 %v1227, 64
  %v1230 = vpop.permute.xlu0 %1229
  %v1232 = vsel %vm112, %v1230, 0
  %1234 = vmatprep.subr.bf16.mxu0 0
  %1235 = vmatpush1.bf16.msra.mxu0 0
  %1236 = vmatprep.subr.bf16.mxu0 0
  %1237 = vmatpush1.bf16.msra.mxu0 0
  %1238 = vmatprep.subr.bf16.mxu0 0
  %1239 = vmatpush1.bf16.msra.mxu0 0
  %1240 = vmatprep.subr.bf16.mxu0 0
  %1241 = vmatpush1.bf16.msra.mxu0 0
  %1242 = vmatprep.subr.bf16.mxu0 0
  %1243 = vmatpush1.bf16.msra.mxu0 0
  %1244 = vmatprep.subr.bf16.mxu0 0
  %1245 = vmatpush1.bf16.msra.mxu0 0
  %1246 = vmatprep.subr.bf16.mxu0 0
  %1247 = vmatpush1.bf16.msra.mxu0 %v199
  %1248 = vmatprep.subr.bf16.mxu0 0
  %1249 = vmatpush1.bf16.msra.mxu0 %v198
  %1250 = vmatprep.subr.bf16.mxu0 0
  %1251 = vmatpush2.bf16.msra.mxu0 0
  %1252 = vmatprep.subr.bf16.mxu0 0
  %1253 = vmatpush2.bf16.msra.mxu0 0
  %1254 = vmatprep.subr.bf16.mxu0 0
  %1255 = vmatpush2.bf16.msra.mxu0 0
  %1256 = vmatprep.subr.bf16.mxu0 0
  %1257 = vmatpush2.bf16.msra.mxu0 0
  %1258 = vmatprep.subr.bf16.mxu0 0
  %1259 = vmatpush2.bf16.msra.mxu0 0
  %1260 = vmatprep.subr.bf16.mxu0 0
  %1261 = vmatpush2.bf16.msra.mxu0 0
  %1262 = vmatprep.subr.bf16.mxu0 0
  %1263 = vmatpush2.bf16.msra.mxu0 0
  %1264 = vmatprep.subr.bf16.mxu0 0
  %1265 = vmatpush2.bf16.msra.mxu0 0
  %1266 = vmatprep.mubr.bf16.mxu0 0
  %1267 = vmatmul.mubr.bf16.gmra.mxu0 %v1232
  %v1268 = vpop.f32.mrf.mxu0
  %v1269 = vadd.f32 0.0, %v1268
  %v1270 = vpop.f32.mrf.mxu0
  %v1271 = vpop.f32.mrf.mxu0
  %v1272 = vpop.f32.mrf.mxu0
  %1273 = vdwg.mxu0
  %v1274 = vadd.f32 %v184, %v1269
  %v1275 = vxor.u32 %v1274, 2147483648
  %v1276 = vmul.f32 %v1275, 1.442695
  %v1277 = vpow.pop %v1276
  %v1278 = vadd.f32 %v1277, 1.0
  %v1279 = vrcp.pop %v1278
  %v1280 = vmul.f32 1.0, %v1279
  %v1281 = vadd.f32 %v1269, %v258
  %1283 = vrot.lane.b32.xlu0 %v1281, 64
  %v1284 = vpop.permute.xlu0 %1283
  %v1286 = vmul.f32 %v1280, %v1284
  %1288 = vrot.lane.b32.xlu0 %v1286, 64
  %v1289 = vpop.permute.xlu0 %1288
  %v1291 = vadd.f32 %v184, %v1289
  %v1292 = vtanh.pop %v1291
  %v1293 = vsub.f32 %v1225, %v1292
  %1295 = vrot.lane.b32.xlu0 %v1293, 96
  %v1296 = vpop.permute.xlu0 %1295
  %v1298 = vmul.f32 %v1280, %v1296
  %1300 = vrot.lane.b32.xlu0 %v1298, 32
  %v1301 = vpop.permute.xlu0 %1300
  %v1303 = vadd.f32 %v1292, %v1301
  %1305 = vrot.lane.b32.xlu0 %v1303, 64
  %v1306 = vpop.permute.xlu0 %1305
  %1309 = vrot.lane.b32.xlu0 %v1226, 96
  %v1310 = vpop.permute.xlu0 %1309
  %v1312 = vsel %vm112, %v1306, %v1310
  %v1313 = vpack.c.bf16 %v1312, %v1312
  %v1315 = vsel %vm317, %v1313, 0
  %1317 = vmatprep.subr.bf16.mxu0 0
  %1318 = vmatpush1.bf16.msra.mxu0 0
  %1319 = vmatprep.subr.bf16.mxu0 0
  %1320 = vmatpush1.bf16.msra.mxu0 0
  %1321 = vmatprep.subr.bf16.mxu0 0
  %1322 = vmatpush1.bf16.msra.mxu0 0
  %1323 = vmatprep.subr.bf16.mxu0 0
  %1324 = vmatpush1.bf16.msra.mxu0 0
  %1325 = vmatprep.subr.bf16.mxu0 0
  %1326 = vmatpush1.bf16.msra.mxu0 %v312
  %1327 = vmatprep.subr.bf16.mxu0 0
  %1328 = vmatpush1.bf16.msra.mxu0 %v311
  %1329 = vmatprep.subr.bf16.mxu0 0
  %1330 = vmatpush1.bf16.msra.mxu0 %v310
  %1331 = vmatprep.subr.bf16.mxu0 0
  %1332 = vmatpush1.bf16.msra.mxu0 %v309
  %1333 = vmatprep.subr.bf16.mxu0 0
  %1334 = vmatpush2.bf16.msra.mxu0 0
  %1335 = vmatprep.subr.bf16.mxu0 0
  %1336 = vmatpush2.bf16.msra.mxu0 0
  %1337 = vmatprep.subr.bf16.mxu0 0
  %1338 = vmatpush2.bf16.msra.mxu0 0
  %1339 = vmatprep.subr.bf16.mxu0 0
  %1340 = vmatpush2.bf16.msra.mxu0 0
  %1341 = vmatprep.subr.bf16.mxu0 0
  %1342 = vmatpush2.bf16.msra.mxu0 0
  %1343 = vmatprep.subr.bf16.mxu0 0
  %1344 = vmatpush2.bf16.msra.mxu0 0
  %1345 = vmatprep.subr.bf16.mxu0 0
  %1346 = vmatpush2.bf16.msra.mxu0 0
  %1347 = vmatprep.subr.bf16.mxu0 0
  %1348 = vmatpush2.bf16.msra.mxu0 0
  %1349 = vmatprep.mubr.bf16.mxu0 0
  %1350 = vmatmul.mubr.bf16.gmra.mxu0 %v1315
  %v1351 = vpop.f32.mrf.mxu0
  %v1352 = vadd.f32 %v292, %v1351
  %v1353 = vpop.f32.mrf.mxu0
  %v1354 = vpop.f32.mrf.mxu0
  %v1355 = vpop.f32.mrf.mxu0
  %1356 = vdwg.mxu0
  %v1357 = vxor.u32 %v1352, 2147483648
  %v1358 = vmul.f32 %v1357, 1.442695
  %v1359 = vpow.pop %v1358
  %v1360 = vadd.f32 %v1359, 1.0
  %v1361 = vrcp.pop %v1360
  %v1362 = vmul.f32 1.0, %v1361
  %1364 = vrot.lane.b32.xlu0 %v1352, 32
  %v1365 = vpop.permute.xlu0 %1364
  %v1367 = vmul.f32 %v1362, %v1365
  %1369 = vrot.lane.b32.xlu0 %v1367, 64
  %v1370 = vpop.permute.xlu0 %1369
  %v1372 = vadd.f32 %v1352, %v1370
  %v1373 = vtanh.pop %v1372
  %v1374 = vsub.f32 %v1226, %v1373
  %1376 = vrot.lane.b32.xlu0 %v1374, 96
  %v1377 = vpop.permute.xlu0 %1376
  %v1379 = vmul.f32 %v1362, %v1377
  %1381 = vrot.lane.b32.xlu0 %v1379, 32
  %v1382 = vpop.permute.xlu0 %1381
  %v1384 = vadd.f32 %v1373, %v1382
  %vm1385 = vcmp.gt.s32.totalorder %v21, 6
  %v1386 = vsel %vm1385, 1, 0
  %1387 = vset.pattern.permute.xlu0 0
  %1388 = vperm.xlu0 %1387, %v1386
  %v1389 = vpop.permute.xlu0 %1388
  %vm1390 = vcmp.eq.s32.totalorder %v1389, 1
  %v1391 = vsel %vm1390, %v1303, %v1225
  %v1392 = vsel %vm1390, %v1384, %v1226
  %v1393 = vpack.c.bf16 %v1391, %v1391
  %1395 = vrot.lane.b32.xlu0 %v1393, 64
  %v1396 = vpop.permute.xlu0 %1395
  %v1398 = vsel %vm112, %v1396, 0
  %1400 = vmatprep.subr.bf16.mxu0 0
  %1401 = vmatpush1.bf16.msra.mxu0 0
  %1402 = vmatprep.subr.bf16.mxu0 0
  %1403 = vmatpush1.bf16.msra.mxu0 0
  %1404 = vmatprep.subr.bf16.mxu0 0
  %1405 = vmatpush1.bf16.msra.mxu0 0
  %1406 = vmatprep.subr.bf16.mxu0 0
  %1407 = vmatpush1.bf16.msra.mxu0 0
  %1408 = vmatprep.subr.bf16.mxu0 0
  %1409 = vmatpush1.bf16.msra.mxu0 0
  %1410 = vmatprep.subr.bf16.mxu0 0
  %1411 = vmatpush1.bf16.msra.mxu0 0
  %1412 = vmatprep.subr.bf16.mxu0 0
  %1413 = vmatpush1.bf16.msra.mxu0 %v199
  %1414 = vmatprep.subr.bf16.mxu0 0
  %1415 = vmatpush1.bf16.msra.mxu0 %v198
  %1416 = vmatprep.subr.bf16.mxu0 0
  %1417 = vmatpush2.bf16.msra.mxu0 0
  %1418 = vmatprep.subr.bf16.mxu0 0
  %1419 = vmatpush2.bf16.msra.mxu0 0
  %1420 = vmatprep.subr.bf16.mxu0 0
  %1421 = vmatpush2.bf16.msra.mxu0 0
  %1422 = vmatprep.subr.bf16.mxu0 0
  %1423 = vmatpush2.bf16.msra.mxu0 0
  %1424 = vmatprep.subr.bf16.mxu0 0
  %1425 = vmatpush2.bf16.msra.mxu0 0
  %1426 = vmatprep.subr.bf16.mxu0 0
  %1427 = vmatpush2.bf16.msra.mxu0 0
  %1428 = vmatprep.subr.bf16.mxu0 0
  %1429 = vmatpush2.bf16.msra.mxu0 0
  %1430 = vmatprep.subr.bf16.mxu0 0
  %1431 = vmatpush2.bf16.msra.mxu0 0
  %1432 = vmatprep.mubr.bf16.mxu0 0
  %1433 = vmatmul.mubr.bf16.gmra.mxu0 %v1398
  %v1434 = vpop.f32.mrf.mxu0
  %v1435 = vadd.f32 0.0, %v1434
  %v1436 = vpop.f32.mrf.mxu0
  %v1437 = vpop.f32.mrf.mxu0
  %v1438 = vpop.f32.mrf.mxu0
  %1439 = vdwg.mxu0
  %v1440 = vadd.f32 %v187, %v1435
  %v1441 = vxor.u32 %v1440, 2147483648
  %v1442 = vmul.f32 %v1441, 1.442695
  %v1443 = vpow.pop %v1442
  %v1444 = vadd.f32 %v1443, 1.0
  %v1445 = vrcp.pop %v1444
  %v1446 = vmul.f32 1.0, %v1445
  %v1447 = vadd.f32 %v1435, %v258
  %1449 = vrot.lane.b32.xlu0 %v1447, 64
  %v1450 = vpop.permute.xlu0 %1449
  %v1452 = vmul.f32 %v1446, %v1450
  %1454 = vrot.lane.b32.xlu0 %v1452, 64
  %v1455 = vpop.permute.xlu0 %1454
  %v1457 = vadd.f32 %v187, %v1455
  %v1458 = vtanh.pop %v1457
  %v1459 = vsub.f32 %v1391, %v1458
  %1461 = vrot.lane.b32.xlu0 %v1459, 96
  %v1462 = vpop.permute.xlu0 %1461
  %v1464 = vmul.f32 %v1446, %v1462
  %1466 = vrot.lane.b32.xlu0 %v1464, 32
  %v1467 = vpop.permute.xlu0 %1466
  %v1469 = vadd.f32 %v1458, %v1467
  %1471 = vrot.lane.b32.xlu0 %v1469, 64
  %v1472 = vpop.permute.xlu0 %1471
  %1475 = vrot.lane.b32.xlu0 %v1392, 96
  %v1476 = vpop.permute.xlu0 %1475
  %v1478 = vsel %vm112, %v1472, %v1476
  %v1479 = vpack.c.bf16 %v1478, %v1478
  %v1481 = vsel %vm317, %v1479, 0
  %1483 = vmatprep.subr.bf16.mxu0 0
  %1484 = vmatpush1.bf16.msra.mxu0 0
  %1485 = vmatprep.subr.bf16.mxu0 0
  %1486 = vmatpush1.bf16.msra.mxu0 0
  %1487 = vmatprep.subr.bf16.mxu0 0
  %1488 = vmatpush1.bf16.msra.mxu0 0
  %1489 = vmatprep.subr.bf16.mxu0 0
  %1490 = vmatpush1.bf16.msra.mxu0 0
  %1491 = vmatprep.subr.bf16.mxu0 0
  %1492 = vmatpush1.bf16.msra.mxu0 %v312
  %1493 = vmatprep.subr.bf16.mxu0 0
  %1494 = vmatpush1.bf16.msra.mxu0 %v311
  %1495 = vmatprep.subr.bf16.mxu0 0
  %1496 = vmatpush1.bf16.msra.mxu0 %v310
  %1497 = vmatprep.subr.bf16.mxu0 0
  %1498 = vmatpush1.bf16.msra.mxu0 %v309
  %1499 = vmatprep.subr.bf16.mxu0 0
  %1500 = vmatpush2.bf16.msra.mxu0 0
  %1501 = vmatprep.subr.bf16.mxu0 0
  %1502 = vmatpush2.bf16.msra.mxu0 0
  %1503 = vmatprep.subr.bf16.mxu0 0
  %1504 = vmatpush2.bf16.msra.mxu0 0
  %1505 = vmatprep.subr.bf16.mxu0 0
  %1506 = vmatpush2.bf16.msra.mxu0 0
  %1507 = vmatprep.subr.bf16.mxu0 0
  %1508 = vmatpush2.bf16.msra.mxu0 0
  %1509 = vmatprep.subr.bf16.mxu0 0
  %1510 = vmatpush2.bf16.msra.mxu0 0
  %1511 = vmatprep.subr.bf16.mxu0 0
  %1512 = vmatpush2.bf16.msra.mxu0 0
  %1513 = vmatprep.subr.bf16.mxu0 0
  %1514 = vmatpush2.bf16.msra.mxu0 0
  %1515 = vmatprep.mubr.bf16.mxu0 0
  %1516 = vmatmul.mubr.bf16.gmra.mxu0 %v1481
  %v1517 = vpop.f32.mrf.mxu0
  %v1518 = vadd.f32 %v292, %v1517
  %v1519 = vpop.f32.mrf.mxu0
  %v1520 = vpop.f32.mrf.mxu0
  %v1521 = vpop.f32.mrf.mxu0
  %1522 = vdwg.mxu0
  %v1523 = vxor.u32 %v1518, 2147483648
  %v1524 = vmul.f32 %v1523, 1.442695
  %v1525 = vpow.pop %v1524
  %v1526 = vadd.f32 %v1525, 1.0
  %v1527 = vrcp.pop %v1526
  %v1528 = vmul.f32 1.0, %v1527
  %1530 = vrot.lane.b32.xlu0 %v1518, 32
  %v1531 = vpop.permute.xlu0 %1530
  %v1533 = vmul.f32 %v1528, %v1531
  %1535 = vrot.lane.b32.xlu0 %v1533, 64
  %v1536 = vpop.permute.xlu0 %1535
  %v1538 = vadd.f32 %v1518, %v1536
  %v1539 = vtanh.pop %v1538
  %v1540 = vsub.f32 %v1392, %v1539
  %1542 = vrot.lane.b32.xlu0 %v1540, 96
  %v1543 = vpop.permute.xlu0 %1542
  %v1545 = vmul.f32 %v1528, %v1543
  %1547 = vrot.lane.b32.xlu0 %v1545, 32
  %v1548 = vpop.permute.xlu0 %1547
  %v1550 = vadd.f32 %v1539, %v1548
  %vm1551 = vcmp.gt.s32.totalorder %v21, 7
  %v1552 = vsel %vm1551, 1, 0
  %1553 = vset.pattern.permute.xlu0 0
  %1554 = vperm.xlu0 %1553, %v1552
  %v1555 = vpop.permute.xlu0 %1554
  %vm1556 = vcmp.eq.s32.totalorder %v1555, 1
  %v1557 = vsel %vm1556, %v1469, %v1391
  %v1558 = vsel %vm1556, %v1550, %v1392
  %1560 = vrot.lane.b32.xlu0 %v1558, 64
  %v1561 = vpop.permute.xlu0 %1560
  %v1562 = vsel %vm112, %v1561, 0
  %1564 = vmatprep.subr.mxu0 0.0
  %1565 = vmatpush1.msra.mxu0 0.0
  %1566 = vmatprep.subr.mxu0 0.0
  %1567 = vmatpush1.msra.mxu0 0.0
  %1568 = vmatprep.subr.mxu0 0.0
  %1569 = vmatpush1.msra.mxu0 0.0
  %1570 = vmatprep.subr.mxu0 0.0
  %1571 = vmatpush1.msra.mxu0 0.0
  %1572 = vmatprep.subr.mxu0 0.0
  %1573 = vmatpush1.msra.mxu0 0.0
  %1574 = vmatprep.subr.mxu0 0.0
  %1575 = vmatpush1.msra.mxu0 0.0
  %1576 = vmatprep.subr.mxu0 0.0
  %1577 = vmatpush1.msra.mxu0 0.0
  %1578 = vmatprep.subr.mxu0 0.0
  %1579 = vmatpush1.msra.mxu0 0.0
  %1580 = vmatprep.subr.mxu0 0.0
  %1581 = vmatpush1.msra.mxu0 0.0
  %1582 = vmatprep.subr.mxu0 0.0
  %1583 = vmatpush1.msra.mxu0 0.0
  %1584 = vmatprep.subr.mxu0 0.0
  %1585 = vmatpush1.msra.mxu0 0.0
  %1586 = vmatprep.subr.mxu0 0.0
  %1587 = vmatpush1.msra.mxu0 0.0
  %1588 = vmatprep.subr.mxu0 0.0
  %1589 = vmatpush1.msra.mxu0 %v45
  %1590 = vmatprep.subr.mxu0 0.0
  %1591 = vmatpush1.msra.mxu0 %v44
  %1592 = vmatprep.subr.mxu0 0.0
  %1593 = vmatpush1.msra.mxu0 %v43
  %1594 = vmatprep.subr.mxu0 0.0
  %1595 = vmatpush1.msra.mxu0 %v42
  %1596 = vmatprep.subr.mxu0 0.0
  %1597 = vmatpush2.msra.mxu0 0.0
  %1598 = vmatprep.subr.mxu0 0.0
  %1599 = vmatpush2.msra.mxu0 0.0
  %1600 = vmatprep.subr.mxu0 0.0
  %1601 = vmatpush2.msra.mxu0 0.0
  %1602 = vmatprep.subr.mxu0 0.0
  %1603 = vmatpush2.msra.mxu0 0.0
  %1604 = vmatprep.subr.mxu0 0.0
  %1605 = vmatpush2.msra.mxu0 0.0
  %1606 = vmatprep.subr.mxu0 0.0
  %1607 = vmatpush2.msra.mxu0 0.0
  %1608 = vmatprep.subr.mxu0 0.0
  %1609 = vmatpush2.msra.mxu0 0.0
  %1610 = vmatprep.subr.mxu0 0.0
  %1611 = vmatpush2.msra.mxu0 0.0
  %1612 = vmatprep.subr.mxu0 0.0
  %1613 = vmatpush2.msra.mxu0 0.0
  %1614 = vmatprep.subr.mxu0 0.0
  %1615 = vmatpush2.msra.mxu0 0.0
  %1616 = vmatprep.subr.mxu0 0.0
  %1617 = vmatpush2.msra.mxu0 0.0
  %1618 = vmatprep.subr.mxu0 0.0
  %1619 = vmatpush2.msra.mxu0 0.0
  %1620 = vmatprep.subr.mxu0 0.0
  %1621 = vmatpush2.msra.mxu0 0.0
  %1622 = vmatprep.subr.mxu0 0.0
  %1623 = vmatpush2.msra.mxu0 0.0
  %1624 = vmatprep.subr.mxu0 0.0
  %1625 = vmatpush2.msra.mxu0 0.0
  %1626 = vmatprep.subr.mxu0 0.0
  %1627 = vmatpush2.msra.mxu0 0.0
  %1628 = vmatprep.mubr.f32.mxu0 0.0
  %1629 = vmatmul.mubr.f32.gmra.mxu0 %v1562
  %v1630 = vpop.f32.mrf.mxu0
  %v1631 = vadd.f32 0.0, %v1630
  %v1632 = vpop.f32.mrf.mxu0
  %1633 = vdwg.mxu0
  %1635 = vrot.lane.b32.xlu0 %v1557, 64
  %v1636 = vpop.permute.xlu0 %1635
  %v1637 = vsel %vm112, %v1636, 0
  %1639 = vmatprep.subr.mxu0 0.0
  %1640 = vmatpush1.msra.mxu0 0.0
  %1641 = vmatprep.subr.mxu0 0.0
  %1642 = vmatpush1.msra.mxu0 0.0
  %1643 = vmatprep.subr.mxu0 0.0
  %1644 = vmatpush1.msra.mxu0 0.0
  %1645 = vmatprep.subr.mxu0 0.0
  %1646 = vmatpush1.msra.mxu0 0.0
  %1647 = vmatprep.subr.mxu0 0.0
  %1648 = vmatpush1.msra.mxu0 0.0
  %1649 = vmatprep.subr.mxu0 0.0
  %1650 = vmatpush1.msra.mxu0 0.0
  %1651 = vmatprep.subr.mxu0 0.0
  %1652 = vmatpush1.msra.mxu0 0.0
  %1653 = vmatprep.subr.mxu0 0.0
  %1654 = vmatpush1.msra.mxu0 0.0
  %1655 = vmatprep.subr.mxu0 0.0
  %1656 = vmatpush1.msra.mxu0 0.0
  %1657 = vmatprep.subr.mxu0 0.0
  %1658 = vmatpush1.msra.mxu0 0.0
  %1659 = vmatprep.subr.mxu0 0.0
  %1660 = vmatpush1.msra.mxu0 0.0
  %1661 = vmatprep.subr.mxu0 0.0
  %1662 = vmatpush1.msra.mxu0 0.0
  %1663 = vmatprep.subr.mxu0 0.0
  %1664 = vmatpush1.msra.mxu0 %v41
  %1665 = vmatprep.subr.mxu0 0.0
  %1666 = vmatpush1.msra.mxu0 %v40
  %1667 = vmatprep.subr.mxu0 0.0
  %1668 = vmatpush1.msra.mxu0 %v39
  %1669 = vmatprep.subr.mxu0 0.0
  %1670 = vmatpush1.msra.mxu0 %v38
  %1671 = vmatprep.subr.mxu0 0.0
  %1672 = vmatpush2.msra.mxu0 0.0
  %1673 = vmatprep.subr.mxu0 0.0
  %1674 = vmatpush2.msra.mxu0 0.0
  %1675 = vmatprep.subr.mxu0 0.0
  %1676 = vmatpush2.msra.mxu0 0.0
  %1677 = vmatprep.subr.mxu0 0.0
  %1678 = vmatpush2.msra.mxu0 0.0
  %1679 = vmatprep.subr.mxu0 0.0
  %1680 = vmatpush2.msra.mxu0 0.0
  %1681 = vmatprep.subr.mxu0 0.0
  %1682 = vmatpush2.msra.mxu0 0.0
  %1683 = vmatprep.subr.mxu0 0.0
  %1684 = vmatpush2.msra.mxu0 0.0
  %1685 = vmatprep.subr.mxu0 0.0
  %1686 = vmatpush2.msra.mxu0 0.0
  %1687 = vmatprep.subr.mxu0 0.0
  %1688 = vmatpush2.msra.mxu0 0.0
  %1689 = vmatprep.subr.mxu0 0.0
  %1690 = vmatpush2.msra.mxu0 0.0
  %1691 = vmatprep.subr.mxu0 0.0
  %1692 = vmatpush2.msra.mxu0 0.0
  %1693 = vmatprep.subr.mxu0 0.0
  %1694 = vmatpush2.msra.mxu0 0.0
  %1695 = vmatprep.subr.mxu0 0.0
  %1696 = vmatpush2.msra.mxu0 0.0
  %1697 = vmatprep.subr.mxu0 0.0
  %1698 = vmatpush2.msra.mxu0 0.0
  %1699 = vmatprep.subr.mxu0 0.0
  %1700 = vmatpush2.msra.mxu0 0.0
  %1701 = vmatprep.subr.mxu0 0.0
  %1702 = vmatpush2.msra.mxu0 0.0
  %1703 = vmatprep.mubr.f32.mxu0 0.0
  %1704 = vmatmul.mubr.f32.gmra.mxu0 %v1637
  %v1705 = vpop.f32.mrf.mxu0
  %v1706 = vadd.f32 %v1631, %v1705
  %v1707 = vpop.f32.mrf.mxu0
  %1708 = vdwg.mxu0
  %v1709 = vlaneseq
  %v1710 = vshrl.u32 %v1709, 7
  %v1711 = vsub.s32 0, %v1710
  %v1712 = vrot.slane %v63, %v1711
  %v1713 = vadd.f32 %v1706, %v1712
  %v1714 = vlaneseq
  %v1715 = vshrl.u32 %v1714, 7
  %v1716 = vsub.s32 0, %v1715
  %v1717 = vrot.slane %v64, %v1716
  %vm1718 = vcmask 130048
  %v1720 = vsel %vm1718, %v1713, 0
  %1722 = vmatprep.subr.mxu0 0.0
  %1723 = vmatpush1.msra.mxu0 0.0
  %1724 = vmatprep.subr.mxu0 0.0
  %1725 = vmatpush1.msra.mxu0 0.0
  %1726 = vmatprep.subr.mxu0 0.0
  %1727 = vmatpush1.msra.mxu0 0.0
  %1728 = vmatprep.subr.mxu0 0.0
  %1729 = vmatpush1.msra.mxu0 0.0
  %1730 = vmatprep.subr.mxu0 0.0
  %1731 = vmatpush1.msra.mxu0 0.0
  %1732 = vmatprep.subr.mxu0 0.0
  %1733 = vmatpush1.msra.mxu0 0.0
  %1734 = vmatprep.subr.mxu0 0.0
  %1735 = vmatpush1.msra.mxu0 0.0
  %1736 = vmatprep.subr.mxu0 0.0
  %1737 = vmatpush1.msra.mxu0 0.0
  %1738 = vmatprep.subr.mxu0 0.0
  %1739 = vmatpush1.msra.mxu0 0.0
  %1740 = vmatprep.subr.mxu0 0.0
  %1741 = vmatpush1.msra.mxu0 0.0
  %1742 = vmatprep.subr.mxu0 0.0
  %1743 = vmatpush1.msra.mxu0 0.0
  %1744 = vmatprep.subr.mxu0 0.0
  %1745 = vmatpush1.msra.mxu0 0.0
  %1746 = vmatprep.subr.mxu0 0.0
  %1747 = vmatpush1.msra.mxu0 0.0
  %1748 = vmatprep.subr.mxu0 0.0
  %1749 = vmatpush1.msra.mxu0 0.0
  %1750 = vmatprep.subr.mxu0 0.0
  %1751 = vmatpush1.msra.mxu0 %v47
  %1752 = vmatprep.subr.mxu0 0.0
  %1753 = vmatpush1.msra.mxu0 %v46
  %1754 = vmatprep.subr.mxu0 0.0
  %1755 = vmatpush2.msra.mxu0 0.0
  %1756 = vmatprep.subr.mxu0 0.0
  %1757 = vmatpush2.msra.mxu0 0.0
  %1758 = vmatprep.subr.mxu0 0.0
  %1759 = vmatpush2.msra.mxu0 0.0
  %1760 = vmatprep.subr.mxu0 0.0
  %1761 = vmatpush2.msra.mxu0 0.0
  %1762 = vmatprep.subr.mxu0 0.0
  %1763 = vmatpush2.msra.mxu0 0.0
  %1764 = vmatprep.subr.mxu0 0.0
  %1765 = vmatpush2.msra.mxu0 0.0
  %1766 = vmatprep.subr.mxu0 0.0
  %1767 = vmatpush2.msra.mxu0 0.0
  %1768 = vmatprep.subr.mxu0 0.0
  %1769 = vmatpush2.msra.mxu0 0.0
  %1770 = vmatprep.subr.mxu0 0.0
  %1771 = vmatpush2.msra.mxu0 0.0
  %1772 = vmatprep.subr.mxu0 0.0
  %1773 = vmatpush2.msra.mxu0 0.0
  %1774 = vmatprep.subr.mxu0 0.0
  %1775 = vmatpush2.msra.mxu0 0.0
  %1776 = vmatprep.subr.mxu0 0.0
  %1777 = vmatpush2.msra.mxu0 0.0
  %1778 = vmatprep.subr.mxu0 0.0
  %1779 = vmatpush2.msra.mxu0 0.0
  %1780 = vmatprep.subr.mxu0 0.0
  %1781 = vmatpush2.msra.mxu0 0.0
  %1782 = vmatprep.subr.mxu0 0.0
  %1783 = vmatpush2.msra.mxu0 0.0
  %1784 = vmatprep.subr.mxu0 0.0
  %1785 = vmatpush2.msra.mxu0 0.0
  %1786 = vmatprep.mubr.f32.mxu0 0.0
  %1787 = vmatmul.mubr.f32.gmra.mxu0 %v1720
  %v1788 = vpop.f32.mrf.mxu0
  %v1789 = vadd.f32 %v1717, %v1788
  %v1790 = vpop.f32.mrf.mxu0
  %1791 = vdwg.mxu0
  %vm1792 = vcmp.gt.f32.partialorder %v1789, 0.0
  %v1793 = vmul.f32 %v1789, 0.01
  %v1794 = vsel %vm1792, %v1789, %v1793
  %v1795 = vlaneseq
  %v1796 = vshrl.u32 %v1795, 7
  %v1797 = vsub.s32 0, %v1796
  %v1798 = vrot.slane %v65, %v1797
  %v1800 = vsel %vm112, %v1794, 0
  %1802 = vmatprep.subr.mxu0 0.0
  %1803 = vmatpush1.msra.mxu0 0.0
  %1804 = vmatprep.subr.mxu0 0.0
  %1805 = vmatpush1.msra.mxu0 0.0
  %1806 = vmatprep.subr.mxu0 0.0
  %1807 = vmatpush1.msra.mxu0 0.0
  %1808 = vmatprep.subr.mxu0 0.0
  %1809 = vmatpush1.msra.mxu0 0.0
  %1810 = vmatprep.subr.mxu0 0.0
  %1811 = vmatpush1.msra.mxu0 0.0
  %1812 = vmatprep.subr.mxu0 0.0
  %1813 = vmatpush1.msra.mxu0 0.0
  %1814 = vmatprep.subr.mxu0 0.0
  %1815 = vmatpush1.msra.mxu0 0.0
  %1816 = vmatprep.subr.mxu0 0.0
  %1817 = vmatpush1.msra.mxu0 0.0
  %1818 = vmatprep.subr.mxu0 0.0
  %1819 = vmatpush1.msra.mxu0 0.0
  %1820 = vmatprep.subr.mxu0 0.0
  %1821 = vmatpush1.msra.mxu0 0.0
  %1822 = vmatprep.subr.mxu0 0.0
  %1823 = vmatpush1.msra.mxu0 0.0
  %1824 = vmatprep.subr.mxu0 0.0
  %1825 = vmatpush1.msra.mxu0 0.0
  %1826 = vmatprep.subr.mxu0 0.0
  %1827 = vmatpush1.msra.mxu0 %v51
  %1828 = vmatprep.subr.mxu0 0.0
  %1829 = vmatpush1.msra.mxu0 %v50
  %1830 = vmatprep.subr.mxu0 0.0
  %1831 = vmatpush1.msra.mxu0 %v49
  %1832 = vmatprep.subr.mxu0 0.0
  %1833 = vmatpush1.msra.mxu0 %v48
  %1834 = vmatprep.subr.mxu0 0.0
  %1835 = vmatpush2.msra.mxu0 0.0
  %1836 = vmatprep.subr.mxu0 0.0
  %1837 = vmatpush2.msra.mxu0 0.0
  %1838 = vmatprep.subr.mxu0 0.0
  %1839 = vmatpush2.msra.mxu0 0.0
  %1840 = vmatprep.subr.mxu0 0.0
  %1841 = vmatpush2.msra.mxu0 0.0
  %1842 = vmatprep.subr.mxu0 0.0
  %1843 = vmatpush2.msra.mxu0 0.0
  %1844 = vmatprep.subr.mxu0 0.0
  %1845 = vmatpush2.msra.mxu0 0.0
  %1846 = vmatprep.subr.mxu0 0.0
  %1847 = vmatpush2.msra.mxu0 0.0
  %1848 = vmatprep.subr.mxu0 0.0
  %1849 = vmatpush2.msra.mxu0 0.0
  %1850 = vmatprep.subr.mxu0 0.0
  %1851 = vmatpush2.msra.mxu0 0.0
  %1852 = vmatprep.subr.mxu0 0.0
  %1853 = vmatpush2.msra.mxu0 0.0
  %1854 = vmatprep.subr.mxu0 0.0
  %1855 = vmatpush2.msra.mxu0 0.0
  %1856 = vmatprep.subr.mxu0 0.0
  %1857 = vmatpush2.msra.mxu0 0.0
  %1858 = vmatprep.subr.mxu0 0.0
  %1859 = vmatpush2.msra.mxu0 0.0
  %1860 = vmatprep.subr.mxu0 0.0
  %1861 = vmatpush2.msra.mxu0 0.0
  %1862 = vmatprep.subr.mxu0 0.0
  %1863 = vmatpush2.msra.mxu0 0.0
  %1864 = vmatprep.subr.mxu0 0.0
  %1865 = vmatpush2.msra.mxu0 0.0
  %1866 = vmatprep.mubr.f32.mxu0 0.0
  %1867 = vmatmul.mubr.f32.gmra.mxu0 %v1800
  %v1868 = vpop.f32.mrf.mxu0
  %v1869 = vadd.f32 %v1798, %v1868
  %v1870 = vpop.f32.mrf.mxu0
  %1871 = vdwg.mxu0
  %vm1872 = vcmp.gt.f32.partialorder %v1869, 0.0
  %v1873 = vmul.f32 %v1869, 0.01
  %v1874 = vsel %vm1872, %v1869, %v1873
  %v1875 = vlaneseq
  %v1876 = vshrl.u32 %v1875, 7
  %v1877 = vsub.s32 0, %v1876
  %v1878 = vrot.slane %v66, %v1877
  %v1880 = vsel %vm112, %v1874, 0
  %1882 = vmatprep.subr.mxu0 0.0
  %1883 = vmatpush1.msra.mxu0 0.0
  %1884 = vmatprep.subr.mxu0 0.0
  %1885 = vmatpush1.msra.mxu0 0.0
  %1886 = vmatprep.subr.mxu0 0.0
  %1887 = vmatpush1.msra.mxu0 0.0
  %1888 = vmatprep.subr.mxu0 0.0
  %1889 = vmatpush1.msra.mxu0 0.0
  %1890 = vmatprep.subr.mxu0 0.0
  %1891 = vmatpush1.msra.mxu0 0.0
  %1892 = vmatprep.subr.mxu0 0.0
  %1893 = vmatpush1.msra.mxu0 0.0
  %1894 = vmatprep.subr.mxu0 0.0
  %1895 = vmatpush1.msra.mxu0 0.0
  %1896 = vmatprep.subr.mxu0 0.0
  %1897 = vmatpush1.msra.mxu0 0.0
  %1898 = vmatprep.subr.mxu0 0.0
  %1899 = vmatpush1.msra.mxu0 0.0
  %1900 = vmatprep.subr.mxu0 0.0
  %1901 = vmatpush1.msra.mxu0 0.0
  %1902 = vmatprep.subr.mxu0 0.0
  %1903 = vmatpush1.msra.mxu0 0.0
  %1904 = vmatprep.subr.mxu0 0.0
  %1905 = vmatpush1.msra.mxu0 0.0
  %1906 = vmatprep.subr.mxu0 0.0
  %1907 = vmatpush1.msra.mxu0 %v55
  %1908 = vmatprep.subr.mxu0 0.0
  %1909 = vmatpush1.msra.mxu0 %v54
  %1910 = vmatprep.subr.mxu0 0.0
  %1911 = vmatpush1.msra.mxu0 %v53
  %1912 = vmatprep.subr.mxu0 0.0
  %1913 = vmatpush1.msra.mxu0 %v52
  %1914 = vmatprep.subr.mxu0 0.0
  %1915 = vmatpush2.msra.mxu0 0.0
  %1916 = vmatprep.subr.mxu0 0.0
  %1917 = vmatpush2.msra.mxu0 0.0
  %1918 = vmatprep.subr.mxu0 0.0
  %1919 = vmatpush2.msra.mxu0 0.0
  %1920 = vmatprep.subr.mxu0 0.0
  %1921 = vmatpush2.msra.mxu0 0.0
  %1922 = vmatprep.subr.mxu0 0.0
  %1923 = vmatpush2.msra.mxu0 0.0
  %1924 = vmatprep.subr.mxu0 0.0
  %1925 = vmatpush2.msra.mxu0 0.0
  %1926 = vmatprep.subr.mxu0 0.0
  %1927 = vmatpush2.msra.mxu0 0.0
  %1928 = vmatprep.subr.mxu0 0.0
  %1929 = vmatpush2.msra.mxu0 0.0
  %1930 = vmatprep.subr.mxu0 0.0
  %1931 = vmatpush2.msra.mxu0 0.0
  %1932 = vmatprep.subr.mxu0 0.0
  %1933 = vmatpush2.msra.mxu0 0.0
  %1934 = vmatprep.subr.mxu0 0.0
  %1935 = vmatpush2.msra.mxu0 0.0
  %1936 = vmatprep.subr.mxu0 0.0
  %1937 = vmatpush2.msra.mxu0 0.0
  %1938 = vmatprep.subr.mxu0 0.0
  %1939 = vmatpush2.msra.mxu0 0.0
  %1940 = vmatprep.subr.mxu0 0.0
  %1941 = vmatpush2.msra.mxu0 0.0
  %1942 = vmatprep.subr.mxu0 0.0
  %1943 = vmatpush2.msra.mxu0 0.0
  %1944 = vmatprep.subr.mxu0 0.0
  %1945 = vmatpush2.msra.mxu0 0.0
  %1946 = vmatprep.mubr.f32.mxu0 0.0
  %1947 = vmatmul.mubr.f32.gmra.mxu0 %v1880
  %v1948 = vpop.f32.mrf.mxu0
  %v1949 = vadd.f32 %v1878, %v1948
  %v1950 = vpop.f32.mrf.mxu0
  %1951 = vdwg.mxu0
  %vm1952 = vcmp.gt.f32.partialorder %v1949, 0.0
  %v1953 = vmul.f32 %v1949, 0.01
  %v1954 = vsel %vm1952, %v1949, %v1953
  %v1955 = vlaneseq
  %v1956 = vshrl.u32 %v1955, 7
  %v1957 = vsub.s32 0, %v1956
  %v1958 = vrot.slane %v67, %v1957
  %v1960 = vsel %vm112, %v1954, 0
  %1962 = vmatprep.subr.mxu0 0.0
  %1963 = vmatpush1.msra.mxu0 0.0
  %1964 = vmatprep.subr.mxu0 0.0
  %1965 = vmatpush1.msra.mxu0 0.0
  %1966 = vmatprep.subr.mxu0 0.0
  %1967 = vmatpush1.msra.mxu0 0.0
  %1968 = vmatprep.subr.mxu0 0.0
  %1969 = vmatpush1.msra.mxu0 0.0
  %1970 = vmatprep.subr.mxu0 0.0
  %1971 = vmatpush1.msra.mxu0 0.0
  %1972 = vmatprep.subr.mxu0 0.0
  %1973 = vmatpush1.msra.mxu0 0.0
  %1974 = vmatprep.subr.mxu0 0.0
  %1975 = vmatpush1.msra.mxu0 0.0
  %1976 = vmatprep.subr.mxu0 0.0
  %1977 = vmatpush1.msra.mxu0 0.0
  %1978 = vmatprep.subr.mxu0 0.0
  %1979 = vmatpush1.msra.mxu0 0.0
  %1980 = vmatprep.subr.mxu0 0.0
  %1981 = vmatpush1.msra.mxu0 0.0
  %1982 = vmatprep.subr.mxu0 0.0
  %1983 = vmatpush1.msra.mxu0 0.0
  %1984 = vmatprep.subr.mxu0 0.0
  %1985 = vmatpush1.msra.mxu0 0.0
  %1986 = vmatprep.subr.mxu0 0.0
  %1987 = vmatpush1.msra.mxu0 %v59
  %1988 = vmatprep.subr.mxu0 0.0
  %1989 = vmatpush1.msra.mxu0 %v58
  %1990 = vmatprep.subr.mxu0 0.0
  %1991 = vmatpush1.msra.mxu0 %v57
  %1992 = vmatprep.subr.mxu0 0.0
  %1993 = vmatpush1.msra.mxu0 %v56
  %1994 = vmatprep.subr.mxu0 0.0
  %1995 = vmatpush2.msra.mxu0 0.0
  %1996 = vmatprep.subr.mxu0 0.0
  %1997 = vmatpush2.msra.mxu0 0.0
  %1998 = vmatprep.subr.mxu0 0.0
  %1999 = vmatpush2.msra.mxu0 0.0
  %2000 = vmatprep.subr.mxu0 0.0
  %2001 = vmatpush2.msra.mxu0 0.0
  %2002 = vmatprep.subr.mxu0 0.0
  %2003 = vmatpush2.msra.mxu0 0.0
  %2004 = vmatprep.subr.mxu0 0.0
  %2005 = vmatpush2.msra.mxu0 0.0
  %2006 = vmatprep.subr.mxu0 0.0
  %2007 = vmatpush2.msra.mxu0 0.0
  %2008 = vmatprep.subr.mxu0 0.0
  %2009 = vmatpush2.msra.mxu0 0.0
  %2010 = vmatprep.subr.mxu0 0.0
  %2011 = vmatpush2.msra.mxu0 0.0
  %2012 = vmatprep.subr.mxu0 0.0
  %2013 = vmatpush2.msra.mxu0 0.0
  %2014 = vmatprep.subr.mxu0 0.0
  %2015 = vmatpush2.msra.mxu0 0.0
  %2016 = vmatprep.subr.mxu0 0.0
  %2017 = vmatpush2.msra.mxu0 0.0
  %2018 = vmatprep.subr.mxu0 0.0
  %2019 = vmatpush2.msra.mxu0 0.0
  %2020 = vmatprep.subr.mxu0 0.0
  %2021 = vmatpush2.msra.mxu0 0.0
  %2022 = vmatprep.subr.mxu0 0.0
  %2023 = vmatpush2.msra.mxu0 0.0
  %2024 = vmatprep.subr.mxu0 0.0
  %2025 = vmatpush2.msra.mxu0 0.0
  %2026 = vmatprep.mubr.f32.mxu0 0.0
  %2027 = vmatmul.mubr.f32.gmra.mxu0 %v1960
  %v2028 = vpop.f32.mrf.mxu0
  %v2029 = vadd.f32 %v1958, %v2028
  %v2030 = vpop.f32.mrf.mxu0
  %2031 = vdwg.mxu0
  %v2032 = vxor.u32 %v2029, 2147483648
  %v2033 = vmul.f32 %v2032, 1.442695
  %v2034 = vpow.pop %v2033
  %v2035 = vadd.f32 %v2034, 1.0
  %v2036 = vrcp.pop %v2035
  %v2037 = vmul.f32 1.0, %v2036
  %vm2038 = vcmask 48128
  %2039 = vst.msk [vmem:[%s5] sm:$0xff] %vm2038, %v2037
  // Predicated region
  $region22: #{feedback_nn_forward.1} parent=0 // pred_check
    _
  $region23: #{feedback_nn_forward.1} parent=0 // pred_check_branch
    %2041 = sbr.rel (0) target = $region25
  $region24: #{feedback_nn_forward.1} parent=0 // pred_region
    _
  $region25: #{feedback_nn_forward.1} parent=0 // pred_fallthru
    _
  // Predicated region
  $region26: #{feedback_nn_forward.1} parent=0 // pred_check
    _
  $region27: #{feedback_nn_forward.1} parent=0 // pred_check_branch
    %2043 = sbr.rel (0) target = $region29
  $region28: #{feedback_nn_forward.1} parent=0 // pred_region
    _
  $region29: #{feedback_nn_forward.1} parent=0 // pred_fallthru
    _

</llo_original>
